<compile_context>
chip_gen: v6e
topology: v6e:2x2x1
jax: 0.10.0
libtpu: 0.0.40
codegen_flags: <defaults>
</compile_context>

<pallas_src>
import jax
import jax.numpy as jnp
from jax.experimental import pallas as pl
from jax.experimental.pallas import tpu as pltpu


def _round_up(x, m):
    return (x + m - 1) // m * m


def _linear_kernel(x_ref, w_ref, b_ref, o_ref):
    """One (tm, tn) output tile: o = x @ W_t + b.

    x_ref: (tm, D)   activation tile in its HBM dtype (cast here to W's dtype)
    w_ref: (D, tn)   pre-transposed weight tile (compute dtype, e.g. bf16)
    b_ref: (1, tn)   bias (f32)
    o_ref: (tm, tn)  output (f32)
    """
    x = x_ref[...].astype(w_ref.dtype)  # in-kernel cast, hidden under the DMA
    if w_ref.dtype == jnp.float32:
        # Exact-f32 opt-in path: force the full-precision MXU decomposition.
        acc = jnp.dot(x, w_ref[...], preferred_element_type=jnp.float32,
                      precision=jax.lax.Precision.HIGHEST)
    else:
        acc = jnp.dot(x, w_ref[...], preferred_element_type=jnp.float32)
    o_ref[...] = (acc + b_ref[...]).astype(o_ref.dtype)


def prepare_linear_classifier_params(weight, bias, *, compute_dtype=jnp.bfloat16,
                                     num_label_splits=None):
    """One-time prep for the frozen probe: transpose, pad, cast.

    weight: (L, D) in PyTorch nn.Linear layout.  bias: (L,).
    Returns a dict consumed by linear_classifier_apply().
    """
    L, D = weight.shape
    assert bias.shape == (L,)
    if num_label_splits is None:
        # >=2 label tiles keeps both v7x TensorCores busy even for single-tile
        # batches, and halves the per-TC resident weight.
        num_label_splits = 2 if _round_up(L, 128) >= 256 else 1
    L_pad = _round_up(L, 128 * num_label_splits)
    w_t = jnp.pad(weight.T, ((0, 0), (0, L_pad - L))).astype(jnp.dtype(compute_dtype))
    b_row = jnp.pad(bias.astype(jnp.float32), (0, L_pad - L)).reshape(1, L_pad)
    return {
        "w_t": w_t,                        # (D, L_pad), compute dtype (bf16 default)
        "bias": b_row,                     # (1, L_pad), f32
        "num_labels": L,
        "label_tile": L_pad // num_label_splits,
    }


_TM_CANDIDATES = (256, 128, 64, 32, 16, 8)


def _pick_batch_tile(B):
    """Pick the batch tile that minimizes padding waste (tie-break: larger)."""
    best_tm, best_pad = _TM_CANDIDATES[0], (-B) % _TM_CANDIDATES[0]
    for tm in _TM_CANDIDATES:
        pad = (-B) % tm
        if pad < best_pad:
            best_tm, best_pad = tm, pad
    return best_tm


def linear_classifier_apply(x, params):
    """x: (B, ...) frozen features; returns (B, num_labels) f32 logits."""
    w_t, b_row = params["w_t"], params["bias"]
    L = params["num_labels"]
    tn = params["label_tile"]
    D, L_pad = w_t.shape

    B = x.shape[0]
    x2d = x.reshape(B, -1)                           # matches x.view(x.size(0), -1)
    assert x2d.shape[1] == D, f"flattened dim {x2d.shape[1]} != weight dim {D}"

    tm = _pick_batch_tile(B)
    B_pad = _round_up(B, tm)
    if B_pad != B:
        # Only hit when B is not a multiple of the chosen tile (never for the
        # usual power-of-two eval batches), keeping the common path free of a
        # wrapper-side HBM pass over the activations.
        x2d = jnp.pad(x2d, ((0, B_pad - B), (0, 0)))

    num_i = B_pad // tm
    num_j = L_pad // tn
    # Label axis OUTER -> weight block index constant across the inner batch
    # sweep -> its DMA is revisit-skipped and W streams from HBM exactly once.
    grid = (num_j, num_i)

    # VMEM budget from actual block bytes: 2 pipeline buffers per operand,
    # plus the in-kernel compute-dtype copy of the x tile, plus slack.
    xb = x2d.dtype.itemsize
    wb = w_t.dtype.itemsize
    buf_bytes = (2 * tm * D * xb        # x tiles
                 + 2 * D * tn * wb      # weight tiles
                 + 2 * tn * 4           # bias
                 + 2 * tm * tn * 4)     # output tiles (f32)
    vmem_limit = int(min(max(buf_bytes + tm * D * wb + (2 << 20), 16 << 20), 64 << 20))

    out = pl.pallas_call(
        _linear_kernel,
        out_shape=jax.ShapeDtypeStruct((B_pad, L_pad), jnp.float32),
        grid_spec=pltpu.PrefetchScalarGridSpec(
            num_scalar_prefetch=0,
            grid=grid,
            in_specs=[
                pl.BlockSpec((tm, D), lambda j, i: (i, 0)),   # x: full feature dim
                pl.BlockSpec((D, tn), lambda j, i: (0, j)),   # W^T: constant over i
                pl.BlockSpec((1, tn), lambda j, i: (0, j)),   # bias
            ],
            out_specs=pl.BlockSpec((tm, tn), lambda j, i: (i, j)),
        ),
        compiler_params=pltpu.CompilerParams(
            dimension_semantics=("parallel", "parallel"),
            vmem_limit_bytes=vmem_limit,
        ),
    )(x2d, w_t, b_row)

    return out[:B, :L]


def linear_classifier_forward(x, weight, bias, *, compute_dtype=jnp.bfloat16):
    """Convenience one-shot wrapper.  Prefer prepare+apply so the frozen-probe
    weight prep (transpose/pad/cast) is hoisted out of the per-step path."""
    params = prepare_linear_classifier_params(weight, bias, compute_dtype=compute_dtype)
    return linear_classifier_apply(x, params)


if __name__ == "__main__":
    key = jax.random.PRNGKey(0)
    k_x, k_w = jax.random.split(key)

    # Frozen features (B, C, H, W) = (2, 4, 16, 16) -> dim = 1024; num_labels =
    # 1000 (not a multiple of 128) exercises the lane padding + label-split path.
    B, C, H, W = 2, 4, 16, 16
    D = C * H * W
    L = 1000

    x = jax.random.normal(k_x, (B, C, H, W), dtype=jnp.float32)

    # Parameter init matching the module's __init__: weight ~ N(0, 0.01), bias = 0.
    weight = 0.01 * jax.random.normal(k_w, (L, D), dtype=jnp.float32)
    bias = jnp.zeros((L,), dtype=jnp.float32)

    # High-precision reference (avoids XLA's default bf16 dot on TPU).
    y_ref = jnp.dot(x.reshape(B, -1), weight.T,
                    precision=jax.lax.Precision.HIGHEST) + bias

    # Default path: bf16 weight/activation stream, f32 accumulation.
    params = prepare_linear_classifier_params(weight, bias)   # prep hoisted once
    y = linear_classifier_apply(x, params)
    jax.block_until_ready(y)
    assert y.shape == (B, L)
    assert jnp.allclose(y, y_ref, atol=3e-2, rtol=3e-2)

    # Opt-in f32 path (matches the PyTorch probe's f32 forward semantics).
    params_f32 = prepare_linear_classifier_params(weight, bias,
                                                  compute_dtype=jnp.float32)
    y_f32 = linear_classifier_apply(x, params_f32)
    jax.block_until_ready(y_f32)
    assert y_f32.shape == (B, L)
    assert jnp.allclose(y_f32, y_ref, atol=1e-2, rtol=1e-2)

    print("KERNEL_OK")
</pallas_src>

<mosaic_0001>
module attributes {stable_mosaic.version = 11 : i64} {
  func.func @_linear_kernel(%arg0: i32, %arg1: i32, %arg2: memref<8x1024xf32, #tpu.memory_space<vmem>>, %arg3: memref<1024x512xbf16, #tpu.memory_space<vmem>>, %arg4: memref<1x512xf32, #tpu.memory_space<vmem>>, %arg5: memref<8x512xf32, #tpu.memory_space<vmem>>) attributes {dimension_semantics = [#tpu.dimension_semantics<parallel>, #tpu.dimension_semantics<parallel>], iteration_bounds = array<i64: 2, 1>, scalar_prefetch = 0 : i64, scratch_operands = 0 : i64, tpu.core_type = #tpu.core_type<tc>, window_params = [{transform_indices = @transform_0, window_bounds = array<i64: 8, 1024>}, {transform_indices = @transform_1, window_bounds = array<i64: 1024, 512>}, {transform_indices = @transform_2, window_bounds = array<i64: 1, 512>}, {transform_indices = @transform_3, window_bounds = array<i64: 8, 512>}]} {
    %c0 = arith.constant 0 : index
    %c0_0 = arith.constant 0 : index
    %0 = vector.load %arg2[%c0, %c0_0] : memref<8x1024xf32, #tpu.memory_space<vmem>>, vector<8x1024xf32>
    %1 = arith.truncf %0 : vector<8x1024xf32> to vector<8x1024xbf16>
    %c0_1 = arith.constant 0 : index
    %c0_2 = arith.constant 0 : index
    %2 = vector.load %arg3[%c0_1, %c0_2] : memref<1024x512xbf16, #tpu.memory_space<vmem>>, vector<1024x512xbf16>
    %cst = arith.constant dense<0.000000e+00> : vector<8x512xf32>
    %3 = tpu.matmul %1, %2, %cst {dimension_numbers = #tpu.dot_dimension_numbers<[1], [0], [0], [1], [0, 0, 1, 1], [], []>} : vector<8x1024xbf16>, vector<1024x512xbf16>, vector<8x512xf32> -> vector<8x512xf32>
    %c0_3 = arith.constant 0 : index
    %c0_4 = arith.constant 0 : index
    %4 = vector.load %arg4[%c0_3, %c0_4] : memref<1x512xf32, #tpu.memory_space<vmem>>, vector<1x512xf32>
    %5 = vector.broadcast %4 : vector<1x512xf32> to vector<8x512xf32>
    %6 = arith.addf %3, %5 : vector<8x512xf32>
    %c0_5 = arith.constant 0 : index
    %c0_6 = arith.constant 0 : index
    %7 = vector.load %arg5[%c0_5, %c0_6] : memref<8x512xf32, #tpu.memory_space<vmem>>, vector<8x512xf32>
    tpu.vector_store %arg5[%c0_5, %c0_6], %6 {strides = array<i32>} : memref<8x512xf32, #tpu.memory_space<vmem>>, vector<8x512xf32>,
    return
  }
  func.func @transform_0(%arg0: i32, %arg1: i32) -> (i32, i32) {
    %c0_i32 = arith.constant 0 : i32
    %c0_i32_0 = arith.constant 0 : i32
    return %arg1, %c0_i32 : i32, i32
  }
  func.func @transform_1(%arg0: i32, %arg1: i32) -> (i32, i32) {
    %c0_i32 = arith.constant 0 : i32
    %c0_i32_0 = arith.constant 0 : i32
    return %c0_i32, %arg0 : i32, i32
  }
  func.func @transform_2(%arg0: i32, %arg1: i32) -> (i32, i32) {
    %c0_i32 = arith.constant 0 : i32
    %c0_i32_0 = arith.constant 0 : i32
    return %c0_i32, %arg0 : i32, i32
  }
  func.func @transform_3(%arg0: i32, %arg1: i32) -> (i32, i32) {
    %c0_i32 = arith.constant 0 : i32
    return %arg1, %arg0 : i32, i32
  }
}

</mosaic_0001>

<llo_original>
// kernel: tpu_custom_call.1
$region0: #{tpu_custom_call.1}
  #allocation0 [shape = 'u32[]', space=smem, size = 0x4, offset = 0x4, fixed_abs, tag = 'smem constant byte address 0x4 - core index']
  #allocation1 [shape = 'u32[144,128]{1,0:T(1,128)}', space=vmem, size = 0x12000, scoped, tag = 'internal scratch']
  %s0 = inlined_call_operand.hbm [shape: f32[8,1024], index: 0, kind: input, shape index: {}]
  %s1 = inlined_call_operand.hbm [shape: bf16[1024,1024], index: 1, kind: input, shape index: {}]
  %s2 = inlined_call_operand.hbm [shape: f32[1,1024], index: 2, kind: input, shape index: {}]
  %s3 = inlined_call_operand.hbm [shape: f32[8,1024], index: 3, kind: output, shape index: {}]
  %s4 = sld [smem:[#allocation0]]
  $region57: #{tpu_custom_call.1} parent=0
    _
  %s6 = ssub.s32 1, %s4
  %s7 = scalar_select 0, %s6, %s4
  $region1: #{tpu_custom_call.1} parent=0
    #allocation2 [shape = 'u8[32768]{0}', space=vmem, size = 0x8000, scoped, tag = 'input window, operand 0, single buffered']
    #allocation3 [shape = 's32[2]{0}', space=sflag, size = 0x8, scoped, tag = 'scoped memory for tpu_custom_call.1']
    #allocation4 [shape = 's32[2]{0}', space=sflag, size = 0x8, scoped, tag = 'scoped memory for tpu_custom_call.1']
    #allocation5 [shape = 'u8[2097152]{0}', space=vmem, size = 0x200000, scoped, tag = 'input window, operand 1']
    #allocation6 [shape = 's32[2]{0}', space=sflag, size = 0x8, scoped, tag = 'scoped memory for tpu_custom_call.1']
    #allocation7 [shape = 'u8[4096]{0}', space=vmem, size = 0x1000, scoped, tag = 'input window, operand 2']
    #allocation8 [shape = 'u8[32768]{0}', space=vmem, size = 0x8000, scoped, tag = 'output window, operand 0']
    %8 = vsyncpa [#allocation3], 0
    %9 = vsyncpa [#allocation6], 0
    %s10 = scalar_lea.sflag [#allocation6], 1
    %11 = vsyncpa %s10, 0
    %12 = vsyncpa [#allocation4], 0
    %s13 = scalar_lea.sflag [#allocation4], 1
    %14 = vsyncpa %s13, 0
    loop: start=0, step=1, limit=4
    $region2: #{tpu_custom_call.1} parent=1 // loop_pre_header
      _
    $region3: #{tpu_custom_call.1} parent=1 // loop_header
      %s16 = sphi 0, %s20
      %p17 = scmp.ge.s32.totalorder %s16, 4
      %s23 = sphi 0, %s35
      %s24 = sphi 0, %s31
      %s25 = sphi 0, %s23
      %s26 = sphi 0, %s24
      %s27 = sphi 0, %s25
      %s28 = sphi 0, %s26
      %s38 = sphi 0, %s40
      %s41 = sphi 0, %s38
      %s42 = sphi 0, %s41
      %s58 = sphi 0, %s42
      %s64 = sphi 0, %s66
      %s67 = sphi 0, %s64
      %s68 = sphi 0, %s67
      %s84 = sphi 0, %s68
      %s90 = sphi 0, %s92
      %s93 = sphi 0, %s90
      %s94 = sphi 0, %s93
      %s110 = sphi 0, %s94
      %s118 = sphi 0, %s120
      %s121 = sphi 0, %s118
      %s122 = sphi 0, %s121
      %s138 = sphi 0, %s122
    $region4: #{tpu_custom_call.1} parent=1 // loop_header_branch
      %19 = sbr.rel (%p17) target = $region8
    $region5: #{tpu_custom_call.1} parent=1 // loop_body
      %s21 = ssub.s32 %s16, 1
      %s22 = ssub.s32 %s16, 2
      %s29 = sadd.s32 1, %s24
      %p30 = scmp.ge.s32.totalorder %s29, 1
      %s31 = scalar_select %p30, 0, %s29
      %s32 = sadd.s32 1, %s23
      %s33 = scalar_select %p30, %s32, %s23
      %p34 = scmp.ge.s32.totalorder %s33, 2
      %s35 = scalar_select %p34, 0, %s33
      %s36 = ssub.s32 %s24, %s31
      %p37 = scmp.eq.s32.totalorder %s36, 0
      %s39 = sadd.s32 %s38, 1
      %s40 = scalar_select %p37, %s38, %s39
      %p43 = pneg %p37
      %p44 = scmp.eq.s32.totalorder %s16, 1
      %p45 = por %p43, %p44
      %p46 = scmp.ne.s32.totalorder %s38, %s41
      %p47 = scmp.eq.s32.totalorder %s16, 0
      %p48 = por %p46, %p47
      %p49 = scmp.ne.s32.totalorder %s38, %s41
      %p50 = scmp.eq.s32.totalorder %s21, 1
      %p51 = por %p49, %p50
      %p52 = scmp.ne.s32.totalorder %s41, %s42
      %p53 = scmp.eq.s32.totalorder %s21, 0
      %p54 = por %p52, %p53
      %p55 = scmp.ne.s32.totalorder %s41, %s42
      %p56 = scmp.eq.s32.totalorder %s22, 1
      %p57 = por %p55, %p56
      %p59 = scmp.ne.s32.totalorder %s42, %s58
      %p60 = scmp.eq.s32.totalorder %s22, 0
      %p61 = por %p59, %p60
      %s62 = ssub.s32 %s23, %s35
      %p63 = scmp.eq.s32.totalorder %s62, 0
      %s65 = sadd.s32 %s64, 1
      %s66 = scalar_select %p63, %s64, %s65
      %p69 = pneg %p63
      %p70 = scmp.eq.s32.totalorder %s16, 1
      %p71 = por %p69, %p70
      %p72 = scmp.ne.s32.totalorder %s64, %s67
      %p73 = scmp.eq.s32.totalorder %s16, 0
      %p74 = por %p72, %p73
      %p75 = scmp.ne.s32.totalorder %s64, %s67
      %p76 = scmp.eq.s32.totalorder %s21, 1
      %p77 = por %p75, %p76
      %p78 = scmp.ne.s32.totalorder %s67, %s68
      %p79 = scmp.eq.s32.totalorder %s21, 0
      %p80 = por %p78, %p79
      %p81 = scmp.ne.s32.totalorder %s67, %s68
      %p82 = scmp.eq.s32.totalorder %s22, 1
      %p83 = por %p81, %p82
      %p85 = scmp.ne.s32.totalorder %s68, %s84
      %p86 = scmp.eq.s32.totalorder %s22, 0
      %p87 = por %p85, %p86
      %s88 = ssub.s32 %s23, %s35
      %p89 = scmp.eq.s32.totalorder %s88, 0
      %s91 = sadd.s32 %s90, 1
      %s92 = scalar_select %p89, %s90, %s91
      %p95 = pneg %p89
      %p96 = scmp.eq.s32.totalorder %s16, 1
      %p97 = por %p95, %p96
      %p98 = scmp.ne.s32.totalorder %s90, %s93
      %p99 = scmp.eq.s32.totalorder %s16, 0
      %p100 = por %p98, %p99
      %p101 = scmp.ne.s32.totalorder %s90, %s93
      %p102 = scmp.eq.s32.totalorder %s21, 1
      %p103 = por %p101, %p102
      %p104 = scmp.ne.s32.totalorder %s93, %s94
      %p105 = scmp.eq.s32.totalorder %s21, 0
      %p106 = por %p104, %p105
      %p107 = scmp.ne.s32.totalorder %s93, %s94
      %p108 = scmp.eq.s32.totalorder %s22, 1
      %p109 = por %p107, %p108
      %p111 = scmp.ne.s32.totalorder %s94, %s110
      %p112 = scmp.eq.s32.totalorder %s22, 0
      %p113 = por %p111, %p112
      %s114 = ssub.s32 %s24, %s31
      %s115 = ssub.s32 %s23, %s35
      %s116 = sor.u32 %s114, %s115
      %p117 = scmp.eq.s32.totalorder %s116, 0
      %s119 = sadd.s32 %s118, 1
      %s120 = scalar_select %p117, %s118, %s119
      %p123 = pneg %p117
      %p124 = scmp.eq.s32.totalorder %s16, 1
      %p125 = por %p123, %p124
      %p126 = scmp.ne.s32.totalorder %s118, %s121
      %p127 = scmp.eq.s32.totalorder %s16, 0
      %p128 = por %p126, %p127
      %p129 = scmp.ne.s32.totalorder %s118, %s121
      %p130 = scmp.eq.s32.totalorder %s21, 1
      %p131 = por %p129, %p130
      %p132 = scmp.ne.s32.totalorder %s121, %s122
      %p133 = scmp.eq.s32.totalorder %s21, 0
      %p134 = por %p132, %p133
      %p135 = scmp.ne.s32.totalorder %s121, %s122
      %p136 = scmp.eq.s32.totalorder %s22, 1
      %p137 = por %p135, %p136
      %p139 = scmp.ne.s32.totalorder %s122, %s138
      %p140 = scmp.eq.s32.totalorder %s22, 0
      %p141 = por %p139, %p140
      %p142 = scmp.le.s32.totalorder 1, %s16
      %p143 = scmp.lt.s32.totalorder %s16, 3
      %p144 = pnand %p142, %p143
      %p145 = pneg %p144
      // Predicated region
      $region9: #{tpu_custom_call.1} parent=5 // pred_check
        _
      $region10: #{tpu_custom_call.1} parent=5 // pred_check_branch
        %147 = sbr.rel (%p144) target = $region12
      $region11: #{tpu_custom_call.1} parent=5 // pred_region
        %s148 = ssub.s32 %s16, 1
        // Predicated region
        $region13: #{tpu_custom_call.1} parent=11 // pred_check
          %p149 = pneg %p54
        $region14: #{tpu_custom_call.1} parent=11 // pred_check_branch
          %151 = sbr.rel (%p149) target = $region16
        $region15: #{tpu_custom_call.1} parent=11 // pred_region
          %s153 = ssub.s32 1024, 1024
          %154 = vsyncadd [#allocation3], %s153
          %s155 = smul.addr %s26, 8
          %s156 = smul.addr %s155, 128
          %s157 = scalar_lea.hbm %s0, %s156
          %s159 = sshll.u32 [#allocation2], 4
          %s160 = int_to_ptr.vmem [resolvable:$true] %s159
          %162 = dma.hbm_to_vmem [thread:$0]  %s157, 1024, %s160, [#allocation3]
        $region16: #{tpu_custom_call.1} parent=11 // pred_fallthru
          _
      $region12: #{tpu_custom_call.1} parent=5 // pred_fallthru
        _
      %p163 = scmp.lt.s32.totalorder %s16, 2
      // Predicated region
      $region17: #{tpu_custom_call.1} parent=5 // pred_check
        %p164 = pneg %p163
      $region18: #{tpu_custom_call.1} parent=5 // pred_check_branch
        %166 = sbr.rel (%p164) target = $region20
      $region19: #{tpu_custom_call.1} parent=5 // pred_region
        // Predicated region
        $region21: #{tpu_custom_call.1} parent=19 // pred_check
          %p167 = pneg %p74
        $region22: #{tpu_custom_call.1} parent=19 // pred_check_branch
          %169 = sbr.rel (%p167) target = $region24
        $region23: #{tpu_custom_call.1} parent=19 // pred_region
          %s170 = sand.u32 %s16, 1
          %s171 = scalar_lea.sflag [#allocation6], %s170
          %s172 = sand.u32 %s64, 1
          %s173 = smul.addr %s172, 2048
          %s174 = scalar_lea.vmem [#allocation5], %s173
          %s175 = smul.u32 4, %s23
          %s177 = ssub.s32 32768, 32768
          %178 = vsyncadd %s171, %s177
          %s179 = smul.addr %s175, 64
          %s180 = scalar_lea.hbm %s1, %s179
          %s181 = sshll.u32 %s174, 4
          %s182 = int_to_ptr.vmem [resolvable:$true] %s181
          %187 = dma.hbm_to_vmem [thread:$0]  %s180, 32768, %s182, %s171, 512, 256, 16
        $region24: #{tpu_custom_call.1} parent=19 // pred_fallthru
          _
        // Predicated region
        $region25: #{tpu_custom_call.1} parent=19 // pred_check
          %p188 = pneg %p100
        $region26: #{tpu_custom_call.1} parent=19 // pred_check_branch
          %190 = sbr.rel (%p188) target = $region28
        $region27: #{tpu_custom_call.1} parent=19 // pred_region
          %s191 = sand.u32 %s16, 1
          %s192 = scalar_lea.sflag [#allocation6], %s191
          %s193 = sand.u32 %s90, 1
          %s194 = smul.addr %s193, 4
          %s195 = scalar_lea.vmem [#allocation7], %s194
          %s196 = smul.u32 4, %s23
          %s198 = ssub.s32 64, 64
          %199 = vsyncadd %s192, %s198
          %s200 = smul.addr %s196, 16
          %s201 = scalar_lea.hbm %s2, %s200
          %s203 = sshll.u32 %s195, 4
          %s204 = int_to_ptr.vmem [resolvable:$true] %s203
          %206 = dma.hbm_to_vmem [thread:$0]  %s201, 64, %s204, %s192
        $region28: #{tpu_custom_call.1} parent=19 // pred_fallthru
          _
      $region20: #{tpu_custom_call.1} parent=5 // pred_fallthru
        _
      %p207 = scmp.le.s32.totalorder 1, %s16
      %p208 = scmp.lt.s32.totalorder %s16, 3
      %p209 = pnand %p207, %p208
      %p210 = pneg %p209
      // Predicated region
      $region29: #{tpu_custom_call.1} parent=5 // pred_check
        _
      $region30: #{tpu_custom_call.1} parent=5 // pred_check_branch
        %212 = sbr.rel (%p209) target = $region32
      $region31: #{tpu_custom_call.1} parent=5 // pred_region
        %s213 = ssub.s32 %s16, 1
        // Predicated region
        $region33: #{tpu_custom_call.1} parent=31 // pred_check
          %p214 = pneg %p54
        $region34: #{tpu_custom_call.1} parent=31 // pred_check_branch
          %216 = sbr.rel (%p214) target = $region36
        $region35: #{tpu_custom_call.1} parent=31 // pred_region
          %217 = dma.done [#allocation3], 1024
        $region36: #{tpu_custom_call.1} parent=31 // pred_fallthru
          _
        %s218 = sand.u32 %s21, 1
        %s219 = scalar_lea.sflag [#allocation6], %s218
        %s220 = sand.u32 %s67, 1
        %s221 = smul.addr %s220, 2048
        %s222 = scalar_lea.vmem [#allocation5], %s221
        // Predicated region
        $region37: #{tpu_custom_call.1} parent=31 // pred_check
          %p223 = pneg %p80
        $region38: #{tpu_custom_call.1} parent=31 // pred_check_branch
          %225 = sbr.rel (%p223) target = $region40
        $region39: #{tpu_custom_call.1} parent=31 // pred_region
          %226 = dma.done %s219, 32768
        $region40: #{tpu_custom_call.1} parent=31 // pred_fallthru
          _
        %s227 = sand.u32 %s21, 1
        %s228 = scalar_lea.sflag [#allocation6], %s227
        %s229 = sand.u32 %s93, 1
        %s230 = smul.addr %s229, 4
        %s231 = scalar_lea.vmem [#allocation7], %s230
        // Predicated region
        $region41: #{tpu_custom_call.1} parent=31 // pred_check
          %p232 = pneg %p106
        $region42: #{tpu_custom_call.1} parent=31 // pred_check_branch
          %234 = sbr.rel (%p232) target = $region44
        $region43: #{tpu_custom_call.1} parent=31 // pred_region
          %235 = dma.done %s228, 64
        $region44: #{tpu_custom_call.1} parent=31 // pred_fallthru
          _
        %p236 = pneg %p54
        %p237 = pneg %p51
        %s238 = sand.u32 %s21, 1
        %s239 = scalar_lea.sflag [#allocation6], %s238
        %s240 = sand.u32 %s67, 1
        %s241 = smul.addr %s240, 2048
        %s242 = scalar_lea.vmem [#allocation5], %s241
        %p243 = pneg %p80
        %p244 = pneg %p77
        %s245 = sand.u32 %s21, 1
        %s246 = scalar_lea.sflag [#allocation6], %s245
        %s247 = sand.u32 %s93, 1
        %s248 = smul.addr %s247, 4
        %s249 = scalar_lea.vmem [#allocation7], %s248
        %p250 = pneg %p106
        %p251 = pneg %p103
        %p252 = pneg %p134
        %p253 = pneg %p131
        %s254 = sand.u32 %s121, 1
        %s255 = scalar_lea.sflag [#allocation4], %s254
        %s256 = sand.u32 %s121, 1
        %s257 = smul.addr %s256, 32
        %s258 = scalar_lea.vmem [#allocation8], %s257
        %s259 = smul.u32 4, %s25
        %s260 = smul.u32 4, %s25
        %s261 = smul.u32 4, %s25
        %v262 = vld [vmem:[#allocation2] sm:$0xff]
        %v263 = vld [vmem:[#allocation2 + $0x8] sm:$0xff]
        %v264 = vld [vmem:[#allocation2 + $0x10] sm:$0xff]
        %v265 = vld [vmem:[#allocation2 + $0x18] sm:$0xff]
        %v266 = vld [vmem:[#allocation2 + $0x20] sm:$0xff]
        %v267 = vld [vmem:[#allocation2 + $0x28] sm:$0xff]
        %v268 = vld [vmem:[#allocation2 + $0x30] sm:$0xff]
        %v269 = vld [vmem:[#allocation2 + $0x38] sm:$0xff]
        %v270 = vpack.c.bf16 %v262, %v262
        %v271 = vpack.c.bf16 %v263, %v263
        %v272 = vpack.c.bf16 %v264, %v264
        %v273 = vpack.c.bf16 %v265, %v265
        %v274 = vpack.c.bf16 %v266, %v266
        %v275 = vpack.c.bf16 %v267, %v267
        %v276 = vpack.c.bf16 %v268, %v268
        %v277 = vpack.c.bf16 %v269, %v269
        %v278 = vld [vmem:[%s222] sm:$0xff]
        %v279 = vld [vmem:[%s222 + $0x8] sm:$0xff]
        %v280 = vld [vmem:[%s222 + $0x10] sm:$0xff]
        %v281 = vld [vmem:[%s222 + $0x18] sm:$0xff]
        %v282 = vld [vmem:[%s222 + $0x20] sm:$0xff]
        %v283 = vld [vmem:[%s222 + $0x28] sm:$0xff]
        %v284 = vld [vmem:[%s222 + $0x30] sm:$0xff]
        %v285 = vld [vmem:[%s222 + $0x38] sm:$0xff]
        %v286 = vld [vmem:[%s222 + $0x40] sm:$0xff]
        %v287 = vld [vmem:[%s222 + $0x48] sm:$0xff]
        %v288 = vld [vmem:[%s222 + $0x50] sm:$0xff]
        %v289 = vld [vmem:[%s222 + $0x58] sm:$0xff]
        %v290 = vld [vmem:[%s222 + $0x60] sm:$0xff]
        %v291 = vld [vmem:[%s222 + $0x68] sm:$0xff]
        %v292 = vld [vmem:[%s222 + $0x70] sm:$0xff]
        %v293 = vld [vmem:[%s222 + $0x78] sm:$0xff]
        %v294 = vld [vmem:[%s222 + $0x80] sm:$0xff]
        %v295 = vld [vmem:[%s222 + $0x88] sm:$0xff]
        %v296 = vld [vmem:[%s222 + $0x90] sm:$0xff]
        %v297 = vld [vmem:[%s222 + $0x98] sm:$0xff]
        %v298 = vld [vmem:[%s222 + $0xa0] sm:$0xff]
        %v299 = vld [vmem:[%s222 + $0xa8] sm:$0xff]
        %v300 = vld [vmem:[%s222 + $0xb0] sm:$0xff]
        %v301 = vld [vmem:[%s222 + $0xb8] sm:$0xff]
        %v302 = vld [vmem:[%s222 + $0xc0] sm:$0xff]
        %v303 = vld [vmem:[%s222 + $0xc8] sm:$0xff]
        %v304 = vld [vmem:[%s222 + $0xd0] sm:$0xff]
        %v305 = vld [vmem:[%s222 + $0xd8] sm:$0xff]
        %v306 = vld [vmem:[%s222 + $0xe0] sm:$0xff]
        %v307 = vld [vmem:[%s222 + $0xe8] sm:$0xff]
        %v308 = vld [vmem:[%s222 + $0xf0] sm:$0xff]
        %v309 = vld [vmem:[%s222 + $0xf8] sm:$0xff]
        %v310 = vld [vmem:[%s222 + $0x100] sm:$0xff]
        %v311 = vld [vmem:[%s222 + $0x108] sm:$0xff]
        %v312 = vld [vmem:[%s222 + $0x110] sm:$0xff]
        %v313 = vld [vmem:[%s222 + $0x118] sm:$0xff]
        %v314 = vld [vmem:[%s222 + $0x120] sm:$0xff]
        %v315 = vld [vmem:[%s222 + $0x128] sm:$0xff]
        %v316 = vld [vmem:[%s222 + $0x130] sm:$0xff]
        %v317 = vld [vmem:[%s222 + $0x138] sm:$0xff]
        %v318 = vld [vmem:[%s222 + $0x140] sm:$0xff]
        %v319 = vld [vmem:[%s222 + $0x148] sm:$0xff]
        %v320 = vld [vmem:[%s222 + $0x150] sm:$0xff]
        %v321 = vld [vmem:[%s222 + $0x158] sm:$0xff]
        %v322 = vld [vmem:[%s222 + $0x160] sm:$0xff]
        %v323 = vld [vmem:[%s222 + $0x168] sm:$0xff]
        %v324 = vld [vmem:[%s222 + $0x170] sm:$0xff]
        %v325 = vld [vmem:[%s222 + $0x178] sm:$0xff]
        %v326 = vld [vmem:[%s222 + $0x180] sm:$0xff]
        %v327 = vld [vmem:[%s222 + $0x188] sm:$0xff]
        %v328 = vld [vmem:[%s222 + $0x190] sm:$0xff]
        %v329 = vld [vmem:[%s222 + $0x198] sm:$0xff]
        %v330 = vld [vmem:[%s222 + $0x1a0] sm:$0xff]
        %v331 = vld [vmem:[%s222 + $0x1a8] sm:$0xff]
        %v332 = vld [vmem:[%s222 + $0x1b0] sm:$0xff]
        %v333 = vld [vmem:[%s222 + $0x1b8] sm:$0xff]
        %v334 = vld [vmem:[%s222 + $0x1c0] sm:$0xff]
        %v335 = vld [vmem:[%s222 + $0x1c8] sm:$0xff]
        %v336 = vld [vmem:[%s222 + $0x1d0] sm:$0xff]
        %v337 = vld [vmem:[%s222 + $0x1d8] sm:$0xff]
        %v338 = vld [vmem:[%s222 + $0x1e0] sm:$0xff]
        %v339 = vld [vmem:[%s222 + $0x1e8] sm:$0xff]
        %v340 = vld [vmem:[%s222 + $0x1f0] sm:$0xff]
        %v341 = vld [vmem:[%s222 + $0x1f8] sm:$0xff]
        %v342 = vld [vmem:[%s222 + $0x200] sm:$0xff]
        %v343 = vld [vmem:[%s222 + $0x208] sm:$0xff]
        %v344 = vld [vmem:[%s222 + $0x210] sm:$0xff]
        %v345 = vld [vmem:[%s222 + $0x218] sm:$0xff]
        %v346 = vld [vmem:[%s222 + $0x220] sm:$0xff]
        %v347 = vld [vmem:[%s222 + $0x228] sm:$0xff]
        %v348 = vld [vmem:[%s222 + $0x230] sm:$0xff]
        %v349 = vld [vmem:[%s222 + $0x238] sm:$0xff]
        %v350 = vld [vmem:[%s222 + $0x240] sm:$0xff]
        %v351 = vld [vmem:[%s222 + $0x248] sm:$0xff]
        %v352 = vld [vmem:[%s222 + $0x250] sm:$0xff]
        %v353 = vld [vmem:[%s222 + $0x258] sm:$0xff]
        %v354 = vld [vmem:[%s222 + $0x260] sm:$0xff]
        %v355 = vld [vmem:[%s222 + $0x268] sm:$0xff]
        %v356 = vld [vmem:[%s222 + $0x270] sm:$0xff]
        %v357 = vld [vmem:[%s222 + $0x278] sm:$0xff]
        %v358 = vld [vmem:[%s222 + $0x280] sm:$0xff]
        %v359 = vld [vmem:[%s222 + $0x288] sm:$0xff]
        %v360 = vld [vmem:[%s222 + $0x290] sm:$0xff]
        %v361 = vld [vmem:[%s222 + $0x298] sm:$0xff]
        %v362 = vld [vmem:[%s222 + $0x2a0] sm:$0xff]
        %v363 = vld [vmem:[%s222 + $0x2a8] sm:$0xff]
        %v364 = vld [vmem:[%s222 + $0x2b0] sm:$0xff]
        %v365 = vld [vmem:[%s222 + $0x2b8] sm:$0xff]
        %v366 = vld [vmem:[%s222 + $0x2c0] sm:$0xff]
        %v367 = vld [vmem:[%s222 + $0x2c8] sm:$0xff]
        %v368 = vld [vmem:[%s222 + $0x2d0] sm:$0xff]
        %v369 = vld [vmem:[%s222 + $0x2d8] sm:$0xff]
        %v370 = vld [vmem:[%s222 + $0x2e0] sm:$0xff]
        %v371 = vld [vmem:[%s222 + $0x2e8] sm:$0xff]
        %v372 = vld [vmem:[%s222 + $0x2f0] sm:$0xff]
        %v373 = vld [vmem:[%s222 + $0x2f8] sm:$0xff]
        %v374 = vld [vmem:[%s222 + $0x300] sm:$0xff]
        %v375 = vld [vmem:[%s222 + $0x308] sm:$0xff]
        %v376 = vld [vmem:[%s222 + $0x310] sm:$0xff]
        %v377 = vld [vmem:[%s222 + $0x318] sm:$0xff]
        %v378 = vld [vmem:[%s222 + $0x320] sm:$0xff]
        %v379 = vld [vmem:[%s222 + $0x328] sm:$0xff]
        %v380 = vld [vmem:[%s222 + $0x330] sm:$0xff]
        %v381 = vld [vmem:[%s222 + $0x338] sm:$0xff]
        %v382 = vld [vmem:[%s222 + $0x340] sm:$0xff]
        %v383 = vld [vmem:[%s222 + $0x348] sm:$0xff]
        %v384 = vld [vmem:[%s222 + $0x350] sm:$0xff]
        %v385 = vld [vmem:[%s222 + $0x358] sm:$0xff]
        %v386 = vld [vmem:[%s222 + $0x360] sm:$0xff]
        %v387 = vld [vmem:[%s222 + $0x368] sm:$0xff]
        %v388 = vld [vmem:[%s222 + $0x370] sm:$0xff]
        %v389 = vld [vmem:[%s222 + $0x378] sm:$0xff]
        %v390 = vld [vmem:[%s222 + $0x380] sm:$0xff]
        %v391 = vld [vmem:[%s222 + $0x388] sm:$0xff]
        %v392 = vld [vmem:[%s222 + $0x390] sm:$0xff]
        %v393 = vld [vmem:[%s222 + $0x398] sm:$0xff]
        %v394 = vld [vmem:[%s222 + $0x3a0] sm:$0xff]
        %v395 = vld [vmem:[%s222 + $0x3a8] sm:$0xff]
        %v396 = vld [vmem:[%s222 + $0x3b0] sm:$0xff]
        %v397 = vld [vmem:[%s222 + $0x3b8] sm:$0xff]
        %v398 = vld [vmem:[%s222 + $0x3c0] sm:$0xff]
        %v399 = vld [vmem:[%s222 + $0x3c8] sm:$0xff]
        %v400 = vld [vmem:[%s222 + $0x3d0] sm:$0xff]
        %v401 = vld [vmem:[%s222 + $0x3d8] sm:$0xff]
        %v402 = vld [vmem:[%s222 + $0x3e0] sm:$0xff]
        %v403 = vld [vmem:[%s222 + $0x3e8] sm:$0xff]
        %v404 = vld [vmem:[%s222 + $0x3f0] sm:$0xff]
        %v405 = vld [vmem:[%s222 + $0x3f8] sm:$0xff]
        %v406 = vld [vmem:[%s222 + $0x400] sm:$0xff]
        %v407 = vld [vmem:[%s222 + $0x408] sm:$0xff]
        %v408 = vld [vmem:[%s222 + $0x410] sm:$0xff]
        %v409 = vld [vmem:[%s222 + $0x418] sm:$0xff]
        %v410 = vld [vmem:[%s222 + $0x420] sm:$0xff]
        %v411 = vld [vmem:[%s222 + $0x428] sm:$0xff]
        %v412 = vld [vmem:[%s222 + $0x430] sm:$0xff]
        %v413 = vld [vmem:[%s222 + $0x438] sm:$0xff]
        %v414 = vld [vmem:[%s222 + $0x440] sm:$0xff]
        %v415 = vld [vmem:[%s222 + $0x448] sm:$0xff]
        %v416 = vld [vmem:[%s222 + $0x450] sm:$0xff]
        %v417 = vld [vmem:[%s222 + $0x458] sm:$0xff]
        %v418 = vld [vmem:[%s222 + $0x460] sm:$0xff]
        %v419 = vld [vmem:[%s222 + $0x468] sm:$0xff]
        %v420 = vld [vmem:[%s222 + $0x470] sm:$0xff]
        %v421 = vld [vmem:[%s222 + $0x478] sm:$0xff]
        %v422 = vld [vmem:[%s222 + $0x480] sm:$0xff]
        %v423 = vld [vmem:[%s222 + $0x488] sm:$0xff]
        %v424 = vld [vmem:[%s222 + $0x490] sm:$0xff]
        %v425 = vld [vmem:[%s222 + $0x498] sm:$0xff]
        %v426 = vld [vmem:[%s222 + $0x4a0] sm:$0xff]
        %v427 = vld [vmem:[%s222 + $0x4a8] sm:$0xff]
        %v428 = vld [vmem:[%s222 + $0x4b0] sm:$0xff]
        %v429 = vld [vmem:[%s222 + $0x4b8] sm:$0xff]
        %v430 = vld [vmem:[%s222 + $0x4c0] sm:$0xff]
        %v431 = vld [vmem:[%s222 + $0x4c8] sm:$0xff]
        %v432 = vld [vmem:[%s222 + $0x4d0] sm:$0xff]
        %v433 = vld [vmem:[%s222 + $0x4d8] sm:$0xff]
        %v434 = vld [vmem:[%s222 + $0x4e0] sm:$0xff]
        %v435 = vld [vmem:[%s222 + $0x4e8] sm:$0xff]
        %v436 = vld [vmem:[%s222 + $0x4f0] sm:$0xff]
        %v437 = vld [vmem:[%s222 + $0x4f8] sm:$0xff]
        %v438 = vld [vmem:[%s222 + $0x500] sm:$0xff]
        %v439 = vld [vmem:[%s222 + $0x508] sm:$0xff]
        %v440 = vld [vmem:[%s222 + $0x510] sm:$0xff]
        %v441 = vld [vmem:[%s222 + $0x518] sm:$0xff]
        %v442 = vld [vmem:[%s222 + $0x520] sm:$0xff]
        %v443 = vld [vmem:[%s222 + $0x528] sm:$0xff]
        %v444 = vld [vmem:[%s222 + $0x530] sm:$0xff]
        %v445 = vld [vmem:[%s222 + $0x538] sm:$0xff]
        %v446 = vld [vmem:[%s222 + $0x540] sm:$0xff]
        %v447 = vld [vmem:[%s222 + $0x548] sm:$0xff]
        %v448 = vld [vmem:[%s222 + $0x550] sm:$0xff]
        %v449 = vld [vmem:[%s222 + $0x558] sm:$0xff]
        %v450 = vld [vmem:[%s222 + $0x560] sm:$0xff]
        %v451 = vld [vmem:[%s222 + $0x568] sm:$0xff]
        %v452 = vld [vmem:[%s222 + $0x570] sm:$0xff]
        %v453 = vld [vmem:[%s222 + $0x578] sm:$0xff]
        %v454 = vld [vmem:[%s222 + $0x580] sm:$0xff]
        %v455 = vld [vmem:[%s222 + $0x588] sm:$0xff]
        %v456 = vld [vmem:[%s222 + $0x590] sm:$0xff]
        %v457 = vld [vmem:[%s222 + $0x598] sm:$0xff]
        %v458 = vld [vmem:[%s222 + $0x5a0] sm:$0xff]
        %v459 = vld [vmem:[%s222 + $0x5a8] sm:$0xff]
        %v460 = vld [vmem:[%s222 + $0x5b0] sm:$0xff]
        %v461 = vld [vmem:[%s222 + $0x5b8] sm:$0xff]
        %v462 = vld [vmem:[%s222 + $0x5c0] sm:$0xff]
        %v463 = vld [vmem:[%s222 + $0x5c8] sm:$0xff]
        %v464 = vld [vmem:[%s222 + $0x5d0] sm:$0xff]
        %v465 = vld [vmem:[%s222 + $0x5d8] sm:$0xff]
        %v466 = vld [vmem:[%s222 + $0x5e0] sm:$0xff]
        %v467 = vld [vmem:[%s222 + $0x5e8] sm:$0xff]
        %v468 = vld [vmem:[%s222 + $0x5f0] sm:$0xff]
        %v469 = vld [vmem:[%s222 + $0x5f8] sm:$0xff]
        %v470 = vld [vmem:[%s222 + $0x600] sm:$0xff]
        %v471 = vld [vmem:[%s222 + $0x608] sm:$0xff]
        %v472 = vld [vmem:[%s222 + $0x610] sm:$0xff]
        %v473 = vld [vmem:[%s222 + $0x618] sm:$0xff]
        %v474 = vld [vmem:[%s222 + $0x620] sm:$0xff]
        %v475 = vld [vmem:[%s222 + $0x628] sm:$0xff]
        %v476 = vld [vmem:[%s222 + $0x630] sm:$0xff]
        %v477 = vld [vmem:[%s222 + $0x638] sm:$0xff]
        %v478 = vld [vmem:[%s222 + $0x640] sm:$0xff]
        %v479 = vld [vmem:[%s222 + $0x648] sm:$0xff]
        %v480 = vld [vmem:[%s222 + $0x650] sm:$0xff]
        %v481 = vld [vmem:[%s222 + $0x658] sm:$0xff]
        %v482 = vld [vmem:[%s222 + $0x660] sm:$0xff]
        %v483 = vld [vmem:[%s222 + $0x668] sm:$0xff]
        %v484 = vld [vmem:[%s222 + $0x670] sm:$0xff]
        %v485 = vld [vmem:[%s222 + $0x678] sm:$0xff]
        %v486 = vld [vmem:[%s222 + $0x680] sm:$0xff]
        %v487 = vld [vmem:[%s222 + $0x688] sm:$0xff]
        %v488 = vld [vmem:[%s222 + $0x690] sm:$0xff]
        %v489 = vld [vmem:[%s222 + $0x698] sm:$0xff]
        %v490 = vld [vmem:[%s222 + $0x6a0] sm:$0xff]
        %v491 = vld [vmem:[%s222 + $0x6a8] sm:$0xff]
        %v492 = vld [vmem:[%s222 + $0x6b0] sm:$0xff]
        %v493 = vld [vmem:[%s222 + $0x6b8] sm:$0xff]
        %v494 = vld [vmem:[%s222 + $0x6c0] sm:$0xff]
        %v495 = vld [vmem:[%s222 + $0x6c8] sm:$0xff]
        %v496 = vld [vmem:[%s222 + $0x6d0] sm:$0xff]
        %v497 = vld [vmem:[%s222 + $0x6d8] sm:$0xff]
        %v498 = vld [vmem:[%s222 + $0x6e0] sm:$0xff]
        %v499 = vld [vmem:[%s222 + $0x6e8] sm:$0xff]
        %v500 = vld [vmem:[%s222 + $0x6f0] sm:$0xff]
        %v501 = vld [vmem:[%s222 + $0x6f8] sm:$0xff]
        %v502 = vld [vmem:[%s222 + $0x700] sm:$0xff]
        %v503 = vld [vmem:[%s222 + $0x708] sm:$0xff]
        %v504 = vld [vmem:[%s222 + $0x710] sm:$0xff]
        %v505 = vld [vmem:[%s222 + $0x718] sm:$0xff]
        %v506 = vld [vmem:[%s222 + $0x720] sm:$0xff]
        %v507 = vld [vmem:[%s222 + $0x728] sm:$0xff]
        %v508 = vld [vmem:[%s222 + $0x730] sm:$0xff]
        %v509 = vld [vmem:[%s222 + $0x738] sm:$0xff]
        %v510 = vld [vmem:[%s222 + $0x740] sm:$0xff]
        %v511 = vld [vmem:[%s222 + $0x748] sm:$0xff]
        %v512 = vld [vmem:[%s222 + $0x750] sm:$0xff]
        %v513 = vld [vmem:[%s222 + $0x758] sm:$0xff]
        %v514 = vld [vmem:[%s222 + $0x760] sm:$0xff]
        %v515 = vld [vmem:[%s222 + $0x768] sm:$0xff]
        %v516 = vld [vmem:[%s222 + $0x770] sm:$0xff]
        %v517 = vld [vmem:[%s222 + $0x778] sm:$0xff]
        %v518 = vld [vmem:[%s222 + $0x780] sm:$0xff]
        %v519 = vld [vmem:[%s222 + $0x788] sm:$0xff]
        %v520 = vld [vmem:[%s222 + $0x790] sm:$0xff]
        %v521 = vld [vmem:[%s222 + $0x798] sm:$0xff]
        %v522 = vld [vmem:[%s222 + $0x7a0] sm:$0xff]
        %v523 = vld [vmem:[%s222 + $0x7a8] sm:$0xff]
        %v524 = vld [vmem:[%s222 + $0x7b0] sm:$0xff]
        %v525 = vld [vmem:[%s222 + $0x7b8] sm:$0xff]
        %v526 = vld [vmem:[%s222 + $0x7c0] sm:$0xff]
        %v527 = vld [vmem:[%s222 + $0x7c8] sm:$0xff]
        %v528 = vld [vmem:[%s222 + $0x7d0] sm:$0xff]
        %v529 = vld [vmem:[%s222 + $0x7d8] sm:$0xff]
        %v530 = vld [vmem:[%s222 + $0x7e0] sm:$0xff]
        %v531 = vld [vmem:[%s222 + $0x7e8] sm:$0xff]
        %v532 = vld [vmem:[%s222 + $0x7f0] sm:$0xff]
        %v533 = vld [vmem:[%s222 + $0x7f8] sm:$0xff]
        %v534 = vld [vmem:[%s231] sm:$0xf]
        %v536 = vlaneseq
        %v537 = vshrl.u32 %v536, 7
        %v538 = vsub.s32 0, %v537
        %v539 = vrot.slane %v534, %v538
        %v540 = vlaneseq
        %v541 = vshrl.u32 %v540, 7
        %v542 = vsub.s32 1, %v541
        %v543 = vrot.slane %v534, %v542
        %v544 = vlaneseq
        %v545 = vshrl.u32 %v544, 7
        %v546 = vsub.s32 2, %v545
        %v547 = vrot.slane %v534, %v546
        %v548 = vlaneseq
        %v549 = vshrl.u32 %v548, 7
        %v550 = vsub.s32 3, %v549
        %v551 = vrot.slane %v534, %v550
        %v812 = vunpack.c.l.b16 %v278
        %v813 = vunpack.c.h.b16 %v278
        %v814 = vunpack.c.l.b16 %v279
        %v815 = vunpack.c.h.b16 %v279
        %v816 = vunpack.c.l.b16 %v280
        %v817 = vunpack.c.h.b16 %v280
        %v818 = vunpack.c.l.b16 %v281
        %v819 = vunpack.c.h.b16 %v281
        %v820 = vunpack.c.l.b16 %v282
        %v821 = vunpack.c.h.b16 %v282
        %v822 = vunpack.c.l.b16 %v283
        %v823 = vunpack.c.h.b16 %v283
        %v824 = vunpack.c.l.b16 %v284
        %v825 = vunpack.c.h.b16 %v284
        %v826 = vunpack.c.l.b16 %v285
        %v827 = vunpack.c.h.b16 %v285
        %v828 = vunpack.c.l.b16 %v286
        %v829 = vunpack.c.h.b16 %v286
        %v830 = vunpack.c.l.b16 %v287
        %v831 = vunpack.c.h.b16 %v287
        %v832 = vunpack.c.l.b16 %v288
        %v833 = vunpack.c.h.b16 %v288
        %v834 = vunpack.c.l.b16 %v289
        %v835 = vunpack.c.h.b16 %v289
        %v836 = vunpack.c.l.b16 %v290
        %v837 = vunpack.c.h.b16 %v290
        %v838 = vunpack.c.l.b16 %v291
        %v839 = vunpack.c.h.b16 %v291
        %v840 = vunpack.c.l.b16 %v292
        %v841 = vunpack.c.h.b16 %v292
        %v842 = vunpack.c.l.b16 %v293
        %v843 = vunpack.c.h.b16 %v293
        %v844 = vunpack.c.l.b16 %v294
        %v845 = vunpack.c.h.b16 %v294
        %v846 = vunpack.c.l.b16 %v295
        %v847 = vunpack.c.h.b16 %v295
        %v848 = vunpack.c.l.b16 %v296
        %v849 = vunpack.c.h.b16 %v296
        %v850 = vunpack.c.l.b16 %v297
        %v851 = vunpack.c.h.b16 %v297
        %v852 = vunpack.c.l.b16 %v298
        %v853 = vunpack.c.h.b16 %v298
        %v854 = vunpack.c.l.b16 %v299
        %v855 = vunpack.c.h.b16 %v299
        %v856 = vunpack.c.l.b16 %v300
        %v857 = vunpack.c.h.b16 %v300
        %v858 = vunpack.c.l.b16 %v301
        %v859 = vunpack.c.h.b16 %v301
        %v860 = vunpack.c.l.b16 %v302
        %v861 = vunpack.c.h.b16 %v302
        %v862 = vunpack.c.l.b16 %v303
        %v863 = vunpack.c.h.b16 %v303
        %v864 = vunpack.c.l.b16 %v304
        %v865 = vunpack.c.h.b16 %v304
        %v866 = vunpack.c.l.b16 %v305
        %v867 = vunpack.c.h.b16 %v305
        %v868 = vunpack.c.l.b16 %v306
        %v869 = vunpack.c.h.b16 %v306
        %v870 = vunpack.c.l.b16 %v307
        %v871 = vunpack.c.h.b16 %v307
        %v872 = vunpack.c.l.b16 %v308
        %v873 = vunpack.c.h.b16 %v308
        %v874 = vunpack.c.l.b16 %v309
        %v875 = vunpack.c.h.b16 %v309
        %v876 = vunpack.c.l.b16 %v310
        %v877 = vunpack.c.h.b16 %v310
        %v878 = vunpack.c.l.b16 %v311
        %v879 = vunpack.c.h.b16 %v311
        %v880 = vunpack.c.l.b16 %v312
        %v881 = vunpack.c.h.b16 %v312
        %v882 = vunpack.c.l.b16 %v313
        %v883 = vunpack.c.h.b16 %v313
        %v884 = vunpack.c.l.b16 %v314
        %v885 = vunpack.c.h.b16 %v314
        %v886 = vunpack.c.l.b16 %v315
        %v887 = vunpack.c.h.b16 %v315
        %v888 = vunpack.c.l.b16 %v316
        %v889 = vunpack.c.h.b16 %v316
        %v890 = vunpack.c.l.b16 %v317
        %v891 = vunpack.c.h.b16 %v317
        %v892 = vunpack.c.l.b16 %v318
        %v893 = vunpack.c.h.b16 %v318
        %v894 = vunpack.c.l.b16 %v319
        %v895 = vunpack.c.h.b16 %v319
        %v896 = vunpack.c.l.b16 %v320
        %v897 = vunpack.c.h.b16 %v320
        %v898 = vunpack.c.l.b16 %v321
        %v899 = vunpack.c.h.b16 %v321
        %v900 = vunpack.c.l.b16 %v322
        %v901 = vunpack.c.h.b16 %v322
        %v902 = vunpack.c.l.b16 %v323
        %v903 = vunpack.c.h.b16 %v323
        %v904 = vunpack.c.l.b16 %v324
        %v905 = vunpack.c.h.b16 %v324
        %v906 = vunpack.c.l.b16 %v325
        %v907 = vunpack.c.h.b16 %v325
        %v908 = vunpack.c.l.b16 %v326
        %v909 = vunpack.c.h.b16 %v326
        %v910 = vunpack.c.l.b16 %v327
        %v911 = vunpack.c.h.b16 %v327
        %v912 = vunpack.c.l.b16 %v328
        %v913 = vunpack.c.h.b16 %v328
        %v914 = vunpack.c.l.b16 %v329
        %v915 = vunpack.c.h.b16 %v329
        %v916 = vunpack.c.l.b16 %v330
        %v917 = vunpack.c.h.b16 %v330
        %v918 = vunpack.c.l.b16 %v331
        %v919 = vunpack.c.h.b16 %v331
        %v920 = vunpack.c.l.b16 %v332
        %v921 = vunpack.c.h.b16 %v332
        %v922 = vunpack.c.l.b16 %v333
        %v923 = vunpack.c.h.b16 %v333
        %v924 = vunpack.c.l.b16 %v334
        %v925 = vunpack.c.h.b16 %v334
        %v926 = vunpack.c.l.b16 %v335
        %v927 = vunpack.c.h.b16 %v335
        %v928 = vunpack.c.l.b16 %v336
        %v929 = vunpack.c.h.b16 %v336
        %v930 = vunpack.c.l.b16 %v337
        %v931 = vunpack.c.h.b16 %v337
        %v932 = vunpack.c.l.b16 %v338
        %v933 = vunpack.c.h.b16 %v338
        %v934 = vunpack.c.l.b16 %v339
        %v935 = vunpack.c.h.b16 %v339
        %v936 = vunpack.c.l.b16 %v340
        %v937 = vunpack.c.h.b16 %v340
        %v938 = vunpack.c.l.b16 %v341
        %v939 = vunpack.c.h.b16 %v341
        %v940 = vunpack.c.l.b16 %v342
        %v941 = vunpack.c.h.b16 %v342
        %v942 = vunpack.c.l.b16 %v343
        %v943 = vunpack.c.h.b16 %v343
        %v944 = vunpack.c.l.b16 %v344
        %v945 = vunpack.c.h.b16 %v344
        %v946 = vunpack.c.l.b16 %v345
        %v947 = vunpack.c.h.b16 %v345
        %v948 = vunpack.c.l.b16 %v346
        %v949 = vunpack.c.h.b16 %v346
        %v950 = vunpack.c.l.b16 %v347
        %v951 = vunpack.c.h.b16 %v347
        %v952 = vunpack.c.l.b16 %v348
        %v953 = vunpack.c.h.b16 %v348
        %v954 = vunpack.c.l.b16 %v349
        %v955 = vunpack.c.h.b16 %v349
        %v956 = vunpack.c.l.b16 %v350
        %v957 = vunpack.c.h.b16 %v350
        %v958 = vunpack.c.l.b16 %v351
        %v959 = vunpack.c.h.b16 %v351
        %v960 = vunpack.c.l.b16 %v352
        %v961 = vunpack.c.h.b16 %v352
        %v962 = vunpack.c.l.b16 %v353
        %v963 = vunpack.c.h.b16 %v353
        %v964 = vunpack.c.l.b16 %v354
        %v965 = vunpack.c.h.b16 %v354
        %v966 = vunpack.c.l.b16 %v355
        %v967 = vunpack.c.h.b16 %v355
        %v968 = vunpack.c.l.b16 %v356
        %v969 = vunpack.c.h.b16 %v356
        %v970 = vunpack.c.l.b16 %v357
        %v971 = vunpack.c.h.b16 %v357
        %v972 = vunpack.c.l.b16 %v358
        %v973 = vunpack.c.h.b16 %v358
        %v974 = vunpack.c.l.b16 %v359
        %v975 = vunpack.c.h.b16 %v359
        %v976 = vunpack.c.l.b16 %v360
        %v977 = vunpack.c.h.b16 %v360
        %v978 = vunpack.c.l.b16 %v361
        %v979 = vunpack.c.h.b16 %v361
        %v980 = vunpack.c.l.b16 %v362
        %v981 = vunpack.c.h.b16 %v362
        %v982 = vunpack.c.l.b16 %v363
        %v983 = vunpack.c.h.b16 %v363
        %v984 = vunpack.c.l.b16 %v364
        %v985 = vunpack.c.h.b16 %v364
        %v986 = vunpack.c.l.b16 %v365
        %v987 = vunpack.c.h.b16 %v365
        %v988 = vunpack.c.l.b16 %v366
        %v989 = vunpack.c.h.b16 %v366
        %v990 = vunpack.c.l.b16 %v367
        %v991 = vunpack.c.h.b16 %v367
        %v992 = vunpack.c.l.b16 %v368
        %v993 = vunpack.c.h.b16 %v368
        %v994 = vunpack.c.l.b16 %v369
        %v995 = vunpack.c.h.b16 %v369
        %v996 = vunpack.c.l.b16 %v370
        %v997 = vunpack.c.h.b16 %v370
        %v998 = vunpack.c.l.b16 %v371
        %v999 = vunpack.c.h.b16 %v371
        %v1000 = vunpack.c.l.b16 %v372
        %v1001 = vunpack.c.h.b16 %v372
        %v1002 = vunpack.c.l.b16 %v373
        %v1003 = vunpack.c.h.b16 %v373
        %v1004 = vunpack.c.l.b16 %v374
        %v1005 = vunpack.c.h.b16 %v374
        %v1006 = vunpack.c.l.b16 %v375
        %v1007 = vunpack.c.h.b16 %v375
        %v1008 = vunpack.c.l.b16 %v376
        %v1009 = vunpack.c.h.b16 %v376
        %v1010 = vunpack.c.l.b16 %v377
        %v1011 = vunpack.c.h.b16 %v377
        %v1012 = vunpack.c.l.b16 %v378
        %v1013 = vunpack.c.h.b16 %v378
        %v1014 = vunpack.c.l.b16 %v379
        %v1015 = vunpack.c.h.b16 %v379
        %v1016 = vunpack.c.l.b16 %v380
        %v1017 = vunpack.c.h.b16 %v380
        %v1018 = vunpack.c.l.b16 %v381
        %v1019 = vunpack.c.h.b16 %v381
        %v1020 = vunpack.c.l.b16 %v382
        %v1021 = vunpack.c.h.b16 %v382
        %v1022 = vunpack.c.l.b16 %v383
        %v1023 = vunpack.c.h.b16 %v383
        %v1024 = vunpack.c.l.b16 %v384
        %v1025 = vunpack.c.h.b16 %v384
        %v1026 = vunpack.c.l.b16 %v385
        %v1027 = vunpack.c.h.b16 %v385
        %v1028 = vunpack.c.l.b16 %v386
        %v1029 = vunpack.c.h.b16 %v386
        %v1030 = vunpack.c.l.b16 %v387
        %v1031 = vunpack.c.h.b16 %v387
        %v1032 = vunpack.c.l.b16 %v388
        %v1033 = vunpack.c.h.b16 %v388
        %v1034 = vunpack.c.l.b16 %v389
        %v1035 = vunpack.c.h.b16 %v389
        %v1036 = vunpack.c.l.b16 %v390
        %v1037 = vunpack.c.h.b16 %v390
        %v1038 = vunpack.c.l.b16 %v391
        %v1039 = vunpack.c.h.b16 %v391
        %v1040 = vunpack.c.l.b16 %v392
        %v1041 = vunpack.c.h.b16 %v392
        %v1042 = vunpack.c.l.b16 %v393
        %v1043 = vunpack.c.h.b16 %v393
        %v1044 = vunpack.c.l.b16 %v394
        %v1045 = vunpack.c.h.b16 %v394
        %v1046 = vunpack.c.l.b16 %v395
        %v1047 = vunpack.c.h.b16 %v395
        %v1048 = vunpack.c.l.b16 %v396
        %v1049 = vunpack.c.h.b16 %v396
        %v1050 = vunpack.c.l.b16 %v397
        %v1051 = vunpack.c.h.b16 %v397
        %v1052 = vunpack.c.l.b16 %v398
        %v1053 = vunpack.c.h.b16 %v398
        %v1054 = vunpack.c.l.b16 %v399
        %v1055 = vunpack.c.h.b16 %v399
        %v1056 = vunpack.c.l.b16 %v400
        %v1057 = vunpack.c.h.b16 %v400
        %v1058 = vunpack.c.l.b16 %v401
        %v1059 = vunpack.c.h.b16 %v401
        %v1060 = vunpack.c.l.b16 %v402
        %v1061 = vunpack.c.h.b16 %v402
        %v1062 = vunpack.c.l.b16 %v403
        %v1063 = vunpack.c.h.b16 %v403
        %v1064 = vunpack.c.l.b16 %v404
        %v1065 = vunpack.c.h.b16 %v404
        %v1066 = vunpack.c.l.b16 %v405
        %v1067 = vunpack.c.h.b16 %v405
        %v1068 = vunpack.c.l.b16 %v406
        %v1069 = vunpack.c.h.b16 %v406
        %v1070 = vunpack.c.l.b16 %v407
        %v1071 = vunpack.c.h.b16 %v407
        %v1072 = vunpack.c.l.b16 %v408
        %v1073 = vunpack.c.h.b16 %v408
        %v1074 = vunpack.c.l.b16 %v409
        %v1075 = vunpack.c.h.b16 %v409
        %v1076 = vunpack.c.l.b16 %v410
        %v1077 = vunpack.c.h.b16 %v410
        %v1078 = vunpack.c.l.b16 %v411
        %v1079 = vunpack.c.h.b16 %v411
        %v1080 = vunpack.c.l.b16 %v412
        %v1081 = vunpack.c.h.b16 %v412
        %v1082 = vunpack.c.l.b16 %v413
        %v1083 = vunpack.c.h.b16 %v413
        %v1084 = vunpack.c.l.b16 %v414
        %v1085 = vunpack.c.h.b16 %v414
        %v1086 = vunpack.c.l.b16 %v415
        %v1087 = vunpack.c.h.b16 %v415
        %v1088 = vunpack.c.l.b16 %v416
        %v1089 = vunpack.c.h.b16 %v416
        %v1090 = vunpack.c.l.b16 %v417
        %v1091 = vunpack.c.h.b16 %v417
        %v1092 = vunpack.c.l.b16 %v418
        %v1093 = vunpack.c.h.b16 %v418
        %v1094 = vunpack.c.l.b16 %v419
        %v1095 = vunpack.c.h.b16 %v419
        %v1096 = vunpack.c.l.b16 %v420
        %v1097 = vunpack.c.h.b16 %v420
        %v1098 = vunpack.c.l.b16 %v421
        %v1099 = vunpack.c.h.b16 %v421
        %v1100 = vunpack.c.l.b16 %v422
        %v1101 = vunpack.c.h.b16 %v422
        %v1102 = vunpack.c.l.b16 %v423
        %v1103 = vunpack.c.h.b16 %v423
        %v1104 = vunpack.c.l.b16 %v424
        %v1105 = vunpack.c.h.b16 %v424
        %v1106 = vunpack.c.l.b16 %v425
        %v1107 = vunpack.c.h.b16 %v425
        %v1108 = vunpack.c.l.b16 %v426
        %v1109 = vunpack.c.h.b16 %v426
        %v1110 = vunpack.c.l.b16 %v427
        %v1111 = vunpack.c.h.b16 %v427
        %v1112 = vunpack.c.l.b16 %v428
        %v1113 = vunpack.c.h.b16 %v428
        %v1114 = vunpack.c.l.b16 %v429
        %v1115 = vunpack.c.h.b16 %v429
        %v1116 = vunpack.c.l.b16 %v430
        %v1117 = vunpack.c.h.b16 %v430
        %v1118 = vunpack.c.l.b16 %v431
        %v1119 = vunpack.c.h.b16 %v431
        %v1120 = vunpack.c.l.b16 %v432
        %v1121 = vunpack.c.h.b16 %v432
        %v1122 = vunpack.c.l.b16 %v433
        %v1123 = vunpack.c.h.b16 %v433
        %v1124 = vunpack.c.l.b16 %v434
        %v1125 = vunpack.c.h.b16 %v434
        %v1126 = vunpack.c.l.b16 %v435
        %v1127 = vunpack.c.h.b16 %v435
        %v1128 = vunpack.c.l.b16 %v436
        %v1129 = vunpack.c.h.b16 %v436
        %v1130 = vunpack.c.l.b16 %v437
        %v1131 = vunpack.c.h.b16 %v437
        %v1132 = vunpack.c.l.b16 %v438
        %v1133 = vunpack.c.h.b16 %v438
        %v1134 = vunpack.c.l.b16 %v439
        %v1135 = vunpack.c.h.b16 %v439
        %v1136 = vunpack.c.l.b16 %v440
        %v1137 = vunpack.c.h.b16 %v440
        %v1138 = vunpack.c.l.b16 %v441
        %v1139 = vunpack.c.h.b16 %v441
        %v1140 = vunpack.c.l.b16 %v442
        %v1141 = vunpack.c.h.b16 %v442
        %v1142 = vunpack.c.l.b16 %v443
        %v1143 = vunpack.c.h.b16 %v443
        %v1144 = vunpack.c.l.b16 %v444
        %v1145 = vunpack.c.h.b16 %v444
        %v1146 = vunpack.c.l.b16 %v445
        %v1147 = vunpack.c.h.b16 %v445
        %v1148 = vunpack.c.l.b16 %v446
        %v1149 = vunpack.c.h.b16 %v446
        %v1150 = vunpack.c.l.b16 %v447
        %v1151 = vunpack.c.h.b16 %v447
        %v1152 = vunpack.c.l.b16 %v448
        %v1153 = vunpack.c.h.b16 %v448
        %v1154 = vunpack.c.l.b16 %v449
        %v1155 = vunpack.c.h.b16 %v449
        %v1156 = vunpack.c.l.b16 %v450
        %v1157 = vunpack.c.h.b16 %v450
        %v1158 = vunpack.c.l.b16 %v451
        %v1159 = vunpack.c.h.b16 %v451
        %v1160 = vunpack.c.l.b16 %v452
        %v1161 = vunpack.c.h.b16 %v452
        %v1162 = vunpack.c.l.b16 %v453
        %v1163 = vunpack.c.h.b16 %v453
        %v1164 = vunpack.c.l.b16 %v454
        %v1165 = vunpack.c.h.b16 %v454
        %v1166 = vunpack.c.l.b16 %v455
        %v1167 = vunpack.c.h.b16 %v455
        %v1168 = vunpack.c.l.b16 %v456
        %v1169 = vunpack.c.h.b16 %v456
        %v1170 = vunpack.c.l.b16 %v457
        %v1171 = vunpack.c.h.b16 %v457
        %v1172 = vunpack.c.l.b16 %v458
        %v1173 = vunpack.c.h.b16 %v458
        %v1174 = vunpack.c.l.b16 %v459
        %v1175 = vunpack.c.h.b16 %v459
        %v1176 = vunpack.c.l.b16 %v460
        %v1177 = vunpack.c.h.b16 %v460
        %v1178 = vunpack.c.l.b16 %v461
        %v1179 = vunpack.c.h.b16 %v461
        %v1180 = vunpack.c.l.b16 %v462
        %v1181 = vunpack.c.h.b16 %v462
        %v1182 = vunpack.c.l.b16 %v463
        %v1183 = vunpack.c.h.b16 %v463
        %v1184 = vunpack.c.l.b16 %v464
        %v1185 = vunpack.c.h.b16 %v464
        %v1186 = vunpack.c.l.b16 %v465
        %v1187 = vunpack.c.h.b16 %v465
        %v1188 = vunpack.c.l.b16 %v466
        %v1189 = vunpack.c.h.b16 %v466
        %v1190 = vunpack.c.l.b16 %v467
        %v1191 = vunpack.c.h.b16 %v467
        %v1192 = vunpack.c.l.b16 %v468
        %v1193 = vunpack.c.h.b16 %v468
        %v1194 = vunpack.c.l.b16 %v469
        %v1195 = vunpack.c.h.b16 %v469
        %v1196 = vunpack.c.l.b16 %v470
        %v1197 = vunpack.c.h.b16 %v470
        %v1198 = vunpack.c.l.b16 %v471
        %v1199 = vunpack.c.h.b16 %v471
        %v1200 = vunpack.c.l.b16 %v472
        %v1201 = vunpack.c.h.b16 %v472
        %v1202 = vunpack.c.l.b16 %v473
        %v1203 = vunpack.c.h.b16 %v473
        %v1204 = vunpack.c.l.b16 %v474
        %v1205 = vunpack.c.h.b16 %v474
        %v1206 = vunpack.c.l.b16 %v475
        %v1207 = vunpack.c.h.b16 %v475
        %v1208 = vunpack.c.l.b16 %v476
        %v1209 = vunpack.c.h.b16 %v476
        %v1210 = vunpack.c.l.b16 %v477
        %v1211 = vunpack.c.h.b16 %v477
        %v1212 = vunpack.c.l.b16 %v478
        %v1213 = vunpack.c.h.b16 %v478
        %v1214 = vunpack.c.l.b16 %v479
        %v1215 = vunpack.c.h.b16 %v479
        %v1216 = vunpack.c.l.b16 %v480
        %v1217 = vunpack.c.h.b16 %v480
        %v1218 = vunpack.c.l.b16 %v481
        %v1219 = vunpack.c.h.b16 %v481
        %v1220 = vunpack.c.l.b16 %v482
        %v1221 = vunpack.c.h.b16 %v482
        %v1222 = vunpack.c.l.b16 %v483
        %v1223 = vunpack.c.h.b16 %v483
        %v1224 = vunpack.c.l.b16 %v484
        %v1225 = vunpack.c.h.b16 %v484
        %v1226 = vunpack.c.l.b16 %v485
        %v1227 = vunpack.c.h.b16 %v485
        %v1228 = vunpack.c.l.b16 %v486
        %v1229 = vunpack.c.h.b16 %v486
        %v1230 = vunpack.c.l.b16 %v487
        %v1231 = vunpack.c.h.b16 %v487
        %v1232 = vunpack.c.l.b16 %v488
        %v1233 = vunpack.c.h.b16 %v488
        %v1234 = vunpack.c.l.b16 %v489
        %v1235 = vunpack.c.h.b16 %v489
        %v1236 = vunpack.c.l.b16 %v490
        %v1237 = vunpack.c.h.b16 %v490
        %v1238 = vunpack.c.l.b16 %v491
        %v1239 = vunpack.c.h.b16 %v491
        %v1240 = vunpack.c.l.b16 %v492
        %v1241 = vunpack.c.h.b16 %v492
        %v1242 = vunpack.c.l.b16 %v493
        %v1243 = vunpack.c.h.b16 %v493
        %v1244 = vunpack.c.l.b16 %v494
        %v1245 = vunpack.c.h.b16 %v494
        %v1246 = vunpack.c.l.b16 %v495
        %v1247 = vunpack.c.h.b16 %v495
        %v1248 = vunpack.c.l.b16 %v496
        %v1249 = vunpack.c.h.b16 %v496
        %v1250 = vunpack.c.l.b16 %v497
        %v1251 = vunpack.c.h.b16 %v497
        %v1252 = vunpack.c.l.b16 %v498
        %v1253 = vunpack.c.h.b16 %v498
        %v1254 = vunpack.c.l.b16 %v499
        %v1255 = vunpack.c.h.b16 %v499
        %v1256 = vunpack.c.l.b16 %v500
        %v1257 = vunpack.c.h.b16 %v500
        %v1258 = vunpack.c.l.b16 %v501
        %v1259 = vunpack.c.h.b16 %v501
        %v1260 = vunpack.c.l.b16 %v502
        %v1261 = vunpack.c.h.b16 %v502
        %v1262 = vunpack.c.l.b16 %v503
        %v1263 = vunpack.c.h.b16 %v503
        %v1264 = vunpack.c.l.b16 %v504
        %v1265 = vunpack.c.h.b16 %v504
        %v1266 = vunpack.c.l.b16 %v505
        %v1267 = vunpack.c.h.b16 %v505
        %v1268 = vunpack.c.l.b16 %v506
        %v1269 = vunpack.c.h.b16 %v506
        %v1270 = vunpack.c.l.b16 %v507
        %v1271 = vunpack.c.h.b16 %v507
        %v1272 = vunpack.c.l.b16 %v508
        %v1273 = vunpack.c.h.b16 %v508
        %v1274 = vunpack.c.l.b16 %v509
        %v1275 = vunpack.c.h.b16 %v509
        %v1276 = vunpack.c.l.b16 %v510
        %v1277 = vunpack.c.h.b16 %v510
        %v1278 = vunpack.c.l.b16 %v511
        %v1279 = vunpack.c.h.b16 %v511
        %v1280 = vunpack.c.l.b16 %v512
        %v1281 = vunpack.c.h.b16 %v512
        %v1282 = vunpack.c.l.b16 %v513
        %v1283 = vunpack.c.h.b16 %v513
        %v1284 = vunpack.c.l.b16 %v514
        %v1285 = vunpack.c.h.b16 %v514
        %v1286 = vunpack.c.l.b16 %v515
        %v1287 = vunpack.c.h.b16 %v515
        %v1288 = vunpack.c.l.b16 %v516
        %v1289 = vunpack.c.h.b16 %v516
        %v1290 = vunpack.c.l.b16 %v517
        %v1291 = vunpack.c.h.b16 %v517
        %v1292 = vunpack.c.l.b16 %v518
        %v1293 = vunpack.c.h.b16 %v518
        %v1294 = vunpack.c.l.b16 %v519
        %v1295 = vunpack.c.h.b16 %v519
        %v1296 = vunpack.c.l.b16 %v520
        %v1297 = vunpack.c.h.b16 %v520
        %v1298 = vunpack.c.l.b16 %v521
        %v1299 = vunpack.c.h.b16 %v521
        %v1300 = vunpack.c.l.b16 %v522
        %v1301 = vunpack.c.h.b16 %v522
        %v1302 = vunpack.c.l.b16 %v523
        %v1303 = vunpack.c.h.b16 %v523
        %v1304 = vunpack.c.l.b16 %v524
        %v1305 = vunpack.c.h.b16 %v524
        %v1306 = vunpack.c.l.b16 %v525
        %v1307 = vunpack.c.h.b16 %v525
        %v1308 = vunpack.c.l.b16 %v526
        %v1309 = vunpack.c.h.b16 %v526
        %v1310 = vunpack.c.l.b16 %v527
        %v1311 = vunpack.c.h.b16 %v527
        %v1312 = vunpack.c.l.b16 %v528
        %v1313 = vunpack.c.h.b16 %v528
        %v1314 = vunpack.c.l.b16 %v529
        %v1315 = vunpack.c.h.b16 %v529
        %v1316 = vunpack.c.l.b16 %v530
        %v1317 = vunpack.c.h.b16 %v530
        %v1318 = vunpack.c.l.b16 %v531
        %v1319 = vunpack.c.h.b16 %v531
        %v1320 = vunpack.c.l.b16 %v532
        %v1321 = vunpack.c.h.b16 %v532
        %v1322 = vunpack.c.l.b16 %v533
        %v1323 = vunpack.c.h.b16 %v533
        %v1324 = vpack.c.b16 %v816, %v812
        %v1325 = vpack.c.b16 %v817, %v813
        %v1326 = vpack.c.b16 %v818, %v814
        %v1327 = vpack.c.b16 %v819, %v815
        %v1328 = vpack.c.b16 %v824, %v820
        %v1329 = vpack.c.b16 %v825, %v821
        %v1330 = vpack.c.b16 %v826, %v822
        %v1331 = vpack.c.b16 %v827, %v823
        %v1332 = vpack.c.b16 %v832, %v828
        %v1333 = vpack.c.b16 %v833, %v829
        %v1334 = vpack.c.b16 %v834, %v830
        %v1335 = vpack.c.b16 %v835, %v831
        %v1336 = vpack.c.b16 %v840, %v836
        %v1337 = vpack.c.b16 %v841, %v837
        %v1338 = vpack.c.b16 %v842, %v838
        %v1339 = vpack.c.b16 %v843, %v839
        %v1340 = vpack.c.b16 %v848, %v844
        %v1341 = vpack.c.b16 %v849, %v845
        %v1342 = vpack.c.b16 %v850, %v846
        %v1343 = vpack.c.b16 %v851, %v847
        %v1344 = vpack.c.b16 %v856, %v852
        %v1345 = vpack.c.b16 %v857, %v853
        %v1346 = vpack.c.b16 %v858, %v854
        %v1347 = vpack.c.b16 %v859, %v855
        %v1348 = vpack.c.b16 %v864, %v860
        %v1349 = vpack.c.b16 %v865, %v861
        %v1350 = vpack.c.b16 %v866, %v862
        %v1351 = vpack.c.b16 %v867, %v863
        %v1352 = vpack.c.b16 %v872, %v868
        %v1353 = vpack.c.b16 %v873, %v869
        %v1354 = vpack.c.b16 %v874, %v870
        %v1355 = vpack.c.b16 %v875, %v871
        %v1356 = vpack.c.b16 %v880, %v876
        %v1357 = vpack.c.b16 %v881, %v877
        %v1358 = vpack.c.b16 %v882, %v878
        %v1359 = vpack.c.b16 %v883, %v879
        %v1360 = vpack.c.b16 %v888, %v884
        %v1361 = vpack.c.b16 %v889, %v885
        %v1362 = vpack.c.b16 %v890, %v886
        %v1363 = vpack.c.b16 %v891, %v887
        %v1364 = vpack.c.b16 %v896, %v892
        %v1365 = vpack.c.b16 %v897, %v893
        %v1366 = vpack.c.b16 %v898, %v894
        %v1367 = vpack.c.b16 %v899, %v895
        %v1368 = vpack.c.b16 %v904, %v900
        %v1369 = vpack.c.b16 %v905, %v901
        %v1370 = vpack.c.b16 %v906, %v902
        %v1371 = vpack.c.b16 %v907, %v903
        %v1372 = vpack.c.b16 %v912, %v908
        %v1373 = vpack.c.b16 %v913, %v909
        %v1374 = vpack.c.b16 %v914, %v910
        %v1375 = vpack.c.b16 %v915, %v911
        %v1376 = vpack.c.b16 %v920, %v916
        %v1377 = vpack.c.b16 %v921, %v917
        %v1378 = vpack.c.b16 %v922, %v918
        %v1379 = vpack.c.b16 %v923, %v919
        %v1380 = vpack.c.b16 %v928, %v924
        %v1381 = vpack.c.b16 %v929, %v925
        %v1382 = vpack.c.b16 %v930, %v926
        %v1383 = vpack.c.b16 %v931, %v927
        %v1384 = vpack.c.b16 %v936, %v932
        %v1385 = vpack.c.b16 %v937, %v933
        %v1386 = vpack.c.b16 %v938, %v934
        %v1387 = vpack.c.b16 %v939, %v935
        %v1388 = vpack.c.b16 %v944, %v940
        %v1389 = vpack.c.b16 %v945, %v941
        %v1390 = vpack.c.b16 %v946, %v942
        %v1391 = vpack.c.b16 %v947, %v943
        %v1392 = vpack.c.b16 %v952, %v948
        %v1393 = vpack.c.b16 %v953, %v949
        %v1394 = vpack.c.b16 %v954, %v950
        %v1395 = vpack.c.b16 %v955, %v951
        %v1396 = vpack.c.b16 %v960, %v956
        %v1397 = vpack.c.b16 %v961, %v957
        %v1398 = vpack.c.b16 %v962, %v958
        %v1399 = vpack.c.b16 %v963, %v959
        %v1400 = vpack.c.b16 %v968, %v964
        %v1401 = vpack.c.b16 %v969, %v965
        %v1402 = vpack.c.b16 %v970, %v966
        %v1403 = vpack.c.b16 %v971, %v967
        %v1404 = vpack.c.b16 %v976, %v972
        %v1405 = vpack.c.b16 %v977, %v973
        %v1406 = vpack.c.b16 %v978, %v974
        %v1407 = vpack.c.b16 %v979, %v975
        %v1408 = vpack.c.b16 %v984, %v980
        %v1409 = vpack.c.b16 %v985, %v981
        %v1410 = vpack.c.b16 %v986, %v982
        %v1411 = vpack.c.b16 %v987, %v983
        %v1412 = vpack.c.b16 %v992, %v988
        %v1413 = vpack.c.b16 %v993, %v989
        %v1414 = vpack.c.b16 %v994, %v990
        %v1415 = vpack.c.b16 %v995, %v991
        %v1416 = vpack.c.b16 %v1000, %v996
        %v1417 = vpack.c.b16 %v1001, %v997
        %v1418 = vpack.c.b16 %v1002, %v998
        %v1419 = vpack.c.b16 %v1003, %v999
        %v1420 = vpack.c.b16 %v1008, %v1004
        %v1421 = vpack.c.b16 %v1009, %v1005
        %v1422 = vpack.c.b16 %v1010, %v1006
        %v1423 = vpack.c.b16 %v1011, %v1007
        %v1424 = vpack.c.b16 %v1016, %v1012
        %v1425 = vpack.c.b16 %v1017, %v1013
        %v1426 = vpack.c.b16 %v1018, %v1014
        %v1427 = vpack.c.b16 %v1019, %v1015
        %v1428 = vpack.c.b16 %v1024, %v1020
        %v1429 = vpack.c.b16 %v1025, %v1021
        %v1430 = vpack.c.b16 %v1026, %v1022
        %v1431 = vpack.c.b16 %v1027, %v1023
        %v1432 = vpack.c.b16 %v1032, %v1028
        %v1433 = vpack.c.b16 %v1033, %v1029
        %v1434 = vpack.c.b16 %v1034, %v1030
        %v1435 = vpack.c.b16 %v1035, %v1031
        %v1436 = vpack.c.b16 %v1040, %v1036
        %v1437 = vpack.c.b16 %v1041, %v1037
        %v1438 = vpack.c.b16 %v1042, %v1038
        %v1439 = vpack.c.b16 %v1043, %v1039
        %v1440 = vpack.c.b16 %v1048, %v1044
        %v1441 = vpack.c.b16 %v1049, %v1045
        %v1442 = vpack.c.b16 %v1050, %v1046
        %v1443 = vpack.c.b16 %v1051, %v1047
        %v1444 = vpack.c.b16 %v1056, %v1052
        %v1445 = vpack.c.b16 %v1057, %v1053
        %v1446 = vpack.c.b16 %v1058, %v1054
        %v1447 = vpack.c.b16 %v1059, %v1055
        %v1448 = vpack.c.b16 %v1064, %v1060
        %v1449 = vpack.c.b16 %v1065, %v1061
        %v1450 = vpack.c.b16 %v1066, %v1062
        %v1451 = vpack.c.b16 %v1067, %v1063
        %v1452 = vpack.c.b16 %v1072, %v1068
        %v1453 = vpack.c.b16 %v1073, %v1069
        %v1454 = vpack.c.b16 %v1074, %v1070
        %v1455 = vpack.c.b16 %v1075, %v1071
        %v1456 = vpack.c.b16 %v1080, %v1076
        %v1457 = vpack.c.b16 %v1081, %v1077
        %v1458 = vpack.c.b16 %v1082, %v1078
        %v1459 = vpack.c.b16 %v1083, %v1079
        %v1460 = vpack.c.b16 %v1088, %v1084
        %v1461 = vpack.c.b16 %v1089, %v1085
        %v1462 = vpack.c.b16 %v1090, %v1086
        %v1463 = vpack.c.b16 %v1091, %v1087
        %v1464 = vpack.c.b16 %v1096, %v1092
        %v1465 = vpack.c.b16 %v1097, %v1093
        %v1466 = vpack.c.b16 %v1098, %v1094
        %v1467 = vpack.c.b16 %v1099, %v1095
        %v1468 = vpack.c.b16 %v1104, %v1100
        %v1469 = vpack.c.b16 %v1105, %v1101
        %v1470 = vpack.c.b16 %v1106, %v1102
        %v1471 = vpack.c.b16 %v1107, %v1103
        %v1472 = vpack.c.b16 %v1112, %v1108
        %v1473 = vpack.c.b16 %v1113, %v1109
        %v1474 = vpack.c.b16 %v1114, %v1110
        %v1475 = vpack.c.b16 %v1115, %v1111
        %v1476 = vpack.c.b16 %v1120, %v1116
        %v1477 = vpack.c.b16 %v1121, %v1117
        %v1478 = vpack.c.b16 %v1122, %v1118
        %v1479 = vpack.c.b16 %v1123, %v1119
        %v1480 = vpack.c.b16 %v1128, %v1124
        %v1481 = vpack.c.b16 %v1129, %v1125
        %v1482 = vpack.c.b16 %v1130, %v1126
        %v1483 = vpack.c.b16 %v1131, %v1127
        %v1484 = vpack.c.b16 %v1136, %v1132
        %v1485 = vpack.c.b16 %v1137, %v1133
        %v1486 = vpack.c.b16 %v1138, %v1134
        %v1487 = vpack.c.b16 %v1139, %v1135
        %v1488 = vpack.c.b16 %v1144, %v1140
        %v1489 = vpack.c.b16 %v1145, %v1141
        %v1490 = vpack.c.b16 %v1146, %v1142
        %v1491 = vpack.c.b16 %v1147, %v1143
        %v1492 = vpack.c.b16 %v1152, %v1148
        %v1493 = vpack.c.b16 %v1153, %v1149
        %v1494 = vpack.c.b16 %v1154, %v1150
        %v1495 = vpack.c.b16 %v1155, %v1151
        %v1496 = vpack.c.b16 %v1160, %v1156
        %v1497 = vpack.c.b16 %v1161, %v1157
        %v1498 = vpack.c.b16 %v1162, %v1158
        %v1499 = vpack.c.b16 %v1163, %v1159
        %v1500 = vpack.c.b16 %v1168, %v1164
        %v1501 = vpack.c.b16 %v1169, %v1165
        %v1502 = vpack.c.b16 %v1170, %v1166
        %v1503 = vpack.c.b16 %v1171, %v1167
        %v1504 = vpack.c.b16 %v1176, %v1172
        %v1505 = vpack.c.b16 %v1177, %v1173
        %v1506 = vpack.c.b16 %v1178, %v1174
        %v1507 = vpack.c.b16 %v1179, %v1175
        %v1508 = vpack.c.b16 %v1184, %v1180
        %v1509 = vpack.c.b16 %v1185, %v1181
        %v1510 = vpack.c.b16 %v1186, %v1182
        %v1511 = vpack.c.b16 %v1187, %v1183
        %v1512 = vpack.c.b16 %v1192, %v1188
        %v1513 = vpack.c.b16 %v1193, %v1189
        %v1514 = vpack.c.b16 %v1194, %v1190
        %v1515 = vpack.c.b16 %v1195, %v1191
        %v1516 = vpack.c.b16 %v1200, %v1196
        %v1517 = vpack.c.b16 %v1201, %v1197
        %v1518 = vpack.c.b16 %v1202, %v1198
        %v1519 = vpack.c.b16 %v1203, %v1199
        %v1520 = vpack.c.b16 %v1208, %v1204
        %v1521 = vpack.c.b16 %v1209, %v1205
        %v1522 = vpack.c.b16 %v1210, %v1206
        %v1523 = vpack.c.b16 %v1211, %v1207
        %v1524 = vpack.c.b16 %v1216, %v1212
        %v1525 = vpack.c.b16 %v1217, %v1213
        %v1526 = vpack.c.b16 %v1218, %v1214
        %v1527 = vpack.c.b16 %v1219, %v1215
        %v1528 = vpack.c.b16 %v1224, %v1220
        %v1529 = vpack.c.b16 %v1225, %v1221
        %v1530 = vpack.c.b16 %v1226, %v1222
        %v1531 = vpack.c.b16 %v1227, %v1223
        %v1532 = vpack.c.b16 %v1232, %v1228
        %v1533 = vpack.c.b16 %v1233, %v1229
        %v1534 = vpack.c.b16 %v1234, %v1230
        %v1535 = vpack.c.b16 %v1235, %v1231
        %v1536 = vpack.c.b16 %v1240, %v1236
        %v1537 = vpack.c.b16 %v1241, %v1237
        %v1538 = vpack.c.b16 %v1242, %v1238
        %v1539 = vpack.c.b16 %v1243, %v1239
        %v1540 = vpack.c.b16 %v1248, %v1244
        %v1541 = vpack.c.b16 %v1249, %v1245
        %v1542 = vpack.c.b16 %v1250, %v1246
        %v1543 = vpack.c.b16 %v1251, %v1247
        %v1544 = vpack.c.b16 %v1256, %v1252
        %v1545 = vpack.c.b16 %v1257, %v1253
        %v1546 = vpack.c.b16 %v1258, %v1254
        %v1547 = vpack.c.b16 %v1259, %v1255
        %v1548 = vpack.c.b16 %v1264, %v1260
        %v1549 = vpack.c.b16 %v1265, %v1261
        %v1550 = vpack.c.b16 %v1266, %v1262
        %v1551 = vpack.c.b16 %v1267, %v1263
        %v1552 = vpack.c.b16 %v1272, %v1268
        %v1553 = vpack.c.b16 %v1273, %v1269
        %v1554 = vpack.c.b16 %v1274, %v1270
        %v1555 = vpack.c.b16 %v1275, %v1271
        %v1556 = vpack.c.b16 %v1280, %v1276
        %v1557 = vpack.c.b16 %v1281, %v1277
        %v1558 = vpack.c.b16 %v1282, %v1278
        %v1559 = vpack.c.b16 %v1283, %v1279
        %v1560 = vpack.c.b16 %v1288, %v1284
        %v1561 = vpack.c.b16 %v1289, %v1285
        %v1562 = vpack.c.b16 %v1290, %v1286
        %v1563 = vpack.c.b16 %v1291, %v1287
        %v1564 = vpack.c.b16 %v1296, %v1292
        %v1565 = vpack.c.b16 %v1297, %v1293
        %v1566 = vpack.c.b16 %v1298, %v1294
        %v1567 = vpack.c.b16 %v1299, %v1295
        %v1568 = vpack.c.b16 %v1304, %v1300
        %v1569 = vpack.c.b16 %v1305, %v1301
        %v1570 = vpack.c.b16 %v1306, %v1302
        %v1571 = vpack.c.b16 %v1307, %v1303
        %v1572 = vpack.c.b16 %v1312, %v1308
        %v1573 = vpack.c.b16 %v1313, %v1309
        %v1574 = vpack.c.b16 %v1314, %v1310
        %v1575 = vpack.c.b16 %v1315, %v1311
        %v1576 = vpack.c.b16 %v1320, %v1316
        %v1577 = vpack.c.b16 %v1321, %v1317
        %v1578 = vpack.c.b16 %v1322, %v1318
        %v1579 = vpack.c.b16 %v1323, %v1319
        %1836 = vmatprep.subr.bf16.mxu0 %v1353
        %1837 = vmatpush1.bf16.msra.mxu0 %v1352
        %1838 = vmatprep.subr.bf16.mxu0 %v1349
        %1839 = vmatpush1.bf16.msra.mxu0 %v1348
        %1840 = vmatprep.subr.bf16.mxu0 %v1345
        %1841 = vmatpush1.bf16.msra.mxu0 %v1344
        %1842 = vmatprep.subr.bf16.mxu0 %v1341
        %1843 = vmatpush1.bf16.msra.mxu0 %v1340
        %1844 = vmatprep.subr.bf16.mxu0 %v1337
        %1845 = vmatpush1.bf16.msra.mxu0 %v1336
        %1846 = vmatprep.subr.bf16.mxu0 %v1333
        %1847 = vmatpush1.bf16.msra.mxu0 %v1332
        %1848 = vmatprep.subr.bf16.mxu0 %v1329
        %1849 = vmatpush1.bf16.msra.mxu0 %v1328
        %1850 = vmatprep.subr.bf16.mxu0 %v1325
        %1851 = vmatpush1.bf16.msra.mxu0 %v1324
        %1852 = vmatprep.subr.bf16.mxu0 %v1385
        %1853 = vmatpush2.bf16.msra.mxu0 %v1384
        %1854 = vmatprep.subr.bf16.mxu0 %v1381
        %1855 = vmatpush2.bf16.msra.mxu0 %v1380
        %1856 = vmatprep.subr.bf16.mxu0 %v1377
        %1857 = vmatpush2.bf16.msra.mxu0 %v1376
        %1858 = vmatprep.subr.bf16.mxu0 %v1373
        %1859 = vmatpush2.bf16.msra.mxu0 %v1372
        %1860 = vmatprep.subr.bf16.mxu0 %v1369
        %1861 = vmatpush2.bf16.msra.mxu0 %v1368
        %1862 = vmatprep.subr.bf16.mxu0 %v1365
        %1863 = vmatpush2.bf16.msra.mxu0 %v1364
        %1864 = vmatprep.subr.bf16.mxu0 %v1361
        %1865 = vmatpush2.bf16.msra.mxu0 %v1360
        %1866 = vmatprep.subr.bf16.mxu0 %v1357
        %1867 = vmatpush2.bf16.msra.mxu0 %v1356
        %1868 = vmatprep.mubr.bf16.mxu0 %v271
        %1869 = vmatmul.mubr.bf16.gmra.mxu0 %v270
        %v1870 = vpop.f32.mrf.mxu0
        %v1871 = vadd.f32 %v539, %v1870
        %v1872 = vpop.f32.mrf.mxu0
        %v1873 = vadd.f32 %v543, %v1872
        %v1874 = vpop.f32.mrf.mxu0
        %v1875 = vpop.f32.mrf.mxu0
        %1876 = vdwg.mxu0
        %1877 = vmatprep.subr.bf16.mxu0 %v1417
        %1878 = vmatpush1.bf16.msra.mxu0 %v1416
        %1879 = vmatprep.subr.bf16.mxu0 %v1413
        %1880 = vmatpush1.bf16.msra.mxu0 %v1412
        %1881 = vmatprep.subr.bf16.mxu0 %v1409
        %1882 = vmatpush1.bf16.msra.mxu0 %v1408
        %1883 = vmatprep.subr.bf16.mxu0 %v1405
        %1884 = vmatpush1.bf16.msra.mxu0 %v1404
        %1885 = vmatprep.subr.bf16.mxu0 %v1401
        %1886 = vmatpush1.bf16.msra.mxu0 %v1400
        %1887 = vmatprep.subr.bf16.mxu0 %v1397
        %1888 = vmatpush1.bf16.msra.mxu0 %v1396
        %1889 = vmatprep.subr.bf16.mxu0 %v1393
        %1890 = vmatpush1.bf16.msra.mxu0 %v1392
        %1891 = vmatprep.subr.bf16.mxu0 %v1389
        %1892 = vmatpush1.bf16.msra.mxu0 %v1388
        %1893 = vmatprep.subr.bf16.mxu0 %v1449
        %1894 = vmatpush2.bf16.msra.mxu0 %v1448
        %1895 = vmatprep.subr.bf16.mxu0 %v1445
        %1896 = vmatpush2.bf16.msra.mxu0 %v1444
        %1897 = vmatprep.subr.bf16.mxu0 %v1441
        %1898 = vmatpush2.bf16.msra.mxu0 %v1440
        %1899 = vmatprep.subr.bf16.mxu0 %v1437
        %1900 = vmatpush2.bf16.msra.mxu0 %v1436
        %1901 = vmatprep.subr.bf16.mxu0 %v1433
        %1902 = vmatpush2.bf16.msra.mxu0 %v1432
        %1903 = vmatprep.subr.bf16.mxu0 %v1429
        %1904 = vmatpush2.bf16.msra.mxu0 %v1428
        %1905 = vmatprep.subr.bf16.mxu0 %v1425
        %1906 = vmatpush2.bf16.msra.mxu0 %v1424
        %1907 = vmatprep.subr.bf16.mxu0 %v1421
        %1908 = vmatpush2.bf16.msra.mxu0 %v1420
        %1909 = vmatprep.mubr.bf16.mxu0 %v273
        %1910 = vmatmul.mubr.bf16.gmra.mxu0 %v272
        %v1911 = vpop.f32.mrf.mxu0
        %v1912 = vadd.f32 %v1871, %v1911
        %v1913 = vpop.f32.mrf.mxu0
        %v1914 = vadd.f32 %v1873, %v1913
        %v1915 = vpop.f32.mrf.mxu0
        %v1916 = vpop.f32.mrf.mxu0
        %1917 = vdwg.mxu0
        %1918 = vmatprep.subr.bf16.mxu0 %v1481
        %1919 = vmatpush1.bf16.msra.mxu0 %v1480
        %1920 = vmatprep.subr.bf16.mxu0 %v1477
        %1921 = vmatpush1.bf16.msra.mxu0 %v1476
        %1922 = vmatprep.subr.bf16.mxu0 %v1473
        %1923 = vmatpush1.bf16.msra.mxu0 %v1472
        %1924 = vmatprep.subr.bf16.mxu0 %v1469
        %1925 = vmatpush1.bf16.msra.mxu0 %v1468
        %1926 = vmatprep.subr.bf16.mxu0 %v1465
        %1927 = vmatpush1.bf16.msra.mxu0 %v1464
        %1928 = vmatprep.subr.bf16.mxu0 %v1461
        %1929 = vmatpush1.bf16.msra.mxu0 %v1460
        %1930 = vmatprep.subr.bf16.mxu0 %v1457
        %1931 = vmatpush1.bf16.msra.mxu0 %v1456
        %1932 = vmatprep.subr.bf16.mxu0 %v1453
        %1933 = vmatpush1.bf16.msra.mxu0 %v1452
        %1934 = vmatprep.subr.bf16.mxu0 %v1513
        %1935 = vmatpush2.bf16.msra.mxu0 %v1512
        %1936 = vmatprep.subr.bf16.mxu0 %v1509
        %1937 = vmatpush2.bf16.msra.mxu0 %v1508
        %1938 = vmatprep.subr.bf16.mxu0 %v1505
        %1939 = vmatpush2.bf16.msra.mxu0 %v1504
        %1940 = vmatprep.subr.bf16.mxu0 %v1501
        %1941 = vmatpush2.bf16.msra.mxu0 %v1500
        %1942 = vmatprep.subr.bf16.mxu0 %v1497
        %1943 = vmatpush2.bf16.msra.mxu0 %v1496
        %1944 = vmatprep.subr.bf16.mxu0 %v1493
        %1945 = vmatpush2.bf16.msra.mxu0 %v1492
        %1946 = vmatprep.subr.bf16.mxu0 %v1489
        %1947 = vmatpush2.bf16.msra.mxu0 %v1488
        %1948 = vmatprep.subr.bf16.mxu0 %v1485
        %1949 = vmatpush2.bf16.msra.mxu0 %v1484
        %1950 = vmatprep.mubr.bf16.mxu0 %v275
        %1951 = vmatmul.mubr.bf16.gmra.mxu0 %v274
        %v1952 = vpop.f32.mrf.mxu0
        %v1953 = vadd.f32 %v1912, %v1952
        %v1954 = vpop.f32.mrf.mxu0
        %v1955 = vadd.f32 %v1914, %v1954
        %v1956 = vpop.f32.mrf.mxu0
        %v1957 = vpop.f32.mrf.mxu0
        %1958 = vdwg.mxu0
        %1959 = vmatprep.subr.bf16.mxu0 %v1545
        %1960 = vmatpush1.bf16.msra.mxu0 %v1544
        %1961 = vmatprep.subr.bf16.mxu0 %v1541
        %1962 = vmatpush1.bf16.msra.mxu0 %v1540
        %1963 = vmatprep.subr.bf16.mxu0 %v1537
        %1964 = vmatpush1.bf16.msra.mxu0 %v1536
        %1965 = vmatprep.subr.bf16.mxu0 %v1533
        %1966 = vmatpush1.bf16.msra.mxu0 %v1532
        %1967 = vmatprep.subr.bf16.mxu0 %v1529
        %1968 = vmatpush1.bf16.msra.mxu0 %v1528
        %1969 = vmatprep.subr.bf16.mxu0 %v1525
        %1970 = vmatpush1.bf16.msra.mxu0 %v1524
        %1971 = vmatprep.subr.bf16.mxu0 %v1521
        %1972 = vmatpush1.bf16.msra.mxu0 %v1520
        %1973 = vmatprep.subr.bf16.mxu0 %v1517
        %1974 = vmatpush1.bf16.msra.mxu0 %v1516
        %1975 = vmatprep.subr.bf16.mxu0 %v1577
        %1976 = vmatpush2.bf16.msra.mxu0 %v1576
        %1977 = vmatprep.subr.bf16.mxu0 %v1573
        %1978 = vmatpush2.bf16.msra.mxu0 %v1572
        %1979 = vmatprep.subr.bf16.mxu0 %v1569
        %1980 = vmatpush2.bf16.msra.mxu0 %v1568
        %1981 = vmatprep.subr.bf16.mxu0 %v1565
        %1982 = vmatpush2.bf16.msra.mxu0 %v1564
        %1983 = vmatprep.subr.bf16.mxu0 %v1561
        %1984 = vmatpush2.bf16.msra.mxu0 %v1560
        %1985 = vmatprep.subr.bf16.mxu0 %v1557
        %1986 = vmatpush2.bf16.msra.mxu0 %v1556
        %1987 = vmatprep.subr.bf16.mxu0 %v1553
        %1988 = vmatpush2.bf16.msra.mxu0 %v1552
        %1989 = vmatprep.subr.bf16.mxu0 %v1549
        %1990 = vmatpush2.bf16.msra.mxu0 %v1548
        %1991 = vmatprep.mubr.bf16.mxu0 %v277
        %1992 = vmatmul.mubr.bf16.gmra.mxu0 %v276
        %v1993 = vpop.f32.mrf.mxu0
        %v1994 = vadd.f32 %v1953, %v1993
        %v1995 = vpop.f32.mrf.mxu0
        %v1996 = vadd.f32 %v1955, %v1995
        %v1997 = vpop.f32.mrf.mxu0
        %v1998 = vpop.f32.mrf.mxu0
        %1999 = vdwg.mxu0
        %2000 = vmatprep.subr.bf16.mxu0 %v1355
        %2001 = vmatpush1.bf16.msra.mxu0 %v1354
        %2002 = vmatprep.subr.bf16.mxu0 %v1351
        %2003 = vmatpush1.bf16.msra.mxu0 %v1350
        %2004 = vmatprep.subr.bf16.mxu0 %v1347
        %2005 = vmatpush1.bf16.msra.mxu0 %v1346
        %2006 = vmatprep.subr.bf16.mxu0 %v1343
        %2007 = vmatpush1.bf16.msra.mxu0 %v1342
        %2008 = vmatprep.subr.bf16.mxu0 %v1339
        %2009 = vmatpush1.bf16.msra.mxu0 %v1338
        %2010 = vmatprep.subr.bf16.mxu0 %v1335
        %2011 = vmatpush1.bf16.msra.mxu0 %v1334
        %2012 = vmatprep.subr.bf16.mxu0 %v1331
        %2013 = vmatpush1.bf16.msra.mxu0 %v1330
        %2014 = vmatprep.subr.bf16.mxu0 %v1327
        %2015 = vmatpush1.bf16.msra.mxu0 %v1326
        %2016 = vmatprep.subr.bf16.mxu0 %v1387
        %2017 = vmatpush2.bf16.msra.mxu0 %v1386
        %2018 = vmatprep.subr.bf16.mxu0 %v1383
        %2019 = vmatpush2.bf16.msra.mxu0 %v1382
        %2020 = vmatprep.subr.bf16.mxu0 %v1379
        %2021 = vmatpush2.bf16.msra.mxu0 %v1378
        %2022 = vmatprep.subr.bf16.mxu0 %v1375
        %2023 = vmatpush2.bf16.msra.mxu0 %v1374
        %2024 = vmatprep.subr.bf16.mxu0 %v1371
        %2025 = vmatpush2.bf16.msra.mxu0 %v1370
        %2026 = vmatprep.subr.bf16.mxu0 %v1367
        %2027 = vmatpush2.bf16.msra.mxu0 %v1366
        %2028 = vmatprep.subr.bf16.mxu0 %v1363
        %2029 = vmatpush2.bf16.msra.mxu0 %v1362
        %2030 = vmatprep.subr.bf16.mxu0 %v1359
        %2031 = vmatpush2.bf16.msra.mxu0 %v1358
        %2032 = vmatprep.mubr.bf16.mxu0 %v271
        %2033 = vmatmul.mubr.bf16.gmra.mxu0 %v270
        %v2034 = vpop.f32.mrf.mxu0
        %v2035 = vadd.f32 %v547, %v2034
        %v2036 = vpop.f32.mrf.mxu0
        %v2037 = vadd.f32 %v551, %v2036
        %v2038 = vpop.f32.mrf.mxu0
        %v2039 = vpop.f32.mrf.mxu0
        %2040 = vdwg.mxu0
        %2041 = vmatprep.subr.bf16.mxu0 %v1419
        %2042 = vmatpush1.bf16.msra.mxu0 %v1418
        %2043 = vmatprep.subr.bf16.mxu0 %v1415
        %2044 = vmatpush1.bf16.msra.mxu0 %v1414
        %2045 = vmatprep.subr.bf16.mxu0 %v1411
        %2046 = vmatpush1.bf16.msra.mxu0 %v1410
        %2047 = vmatprep.subr.bf16.mxu0 %v1407
        %2048 = vmatpush1.bf16.msra.mxu0 %v1406
        %2049 = vmatprep.subr.bf16.mxu0 %v1403
        %2050 = vmatpush1.bf16.msra.mxu0 %v1402
        %2051 = vmatprep.subr.bf16.mxu0 %v1399
        %2052 = vmatpush1.bf16.msra.mxu0 %v1398
        %2053 = vmatprep.subr.bf16.mxu0 %v1395
        %2054 = vmatpush1.bf16.msra.mxu0 %v1394
        %2055 = vmatprep.subr.bf16.mxu0 %v1391
        %2056 = vmatpush1.bf16.msra.mxu0 %v1390
        %2057 = vmatprep.subr.bf16.mxu0 %v1451
        %2058 = vmatpush2.bf16.msra.mxu0 %v1450
        %2059 = vmatprep.subr.bf16.mxu0 %v1447
        %2060 = vmatpush2.bf16.msra.mxu0 %v1446
        %2061 = vmatprep.subr.bf16.mxu0 %v1443
        %2062 = vmatpush2.bf16.msra.mxu0 %v1442
        %2063 = vmatprep.subr.bf16.mxu0 %v1439
        %2064 = vmatpush2.bf16.msra.mxu0 %v1438
        %2065 = vmatprep.subr.bf16.mxu0 %v1435
        %2066 = vmatpush2.bf16.msra.mxu0 %v1434
        %2067 = vmatprep.subr.bf16.mxu0 %v1431
        %2068 = vmatpush2.bf16.msra.mxu0 %v1430
        %2069 = vmatprep.subr.bf16.mxu0 %v1427
        %2070 = vmatpush2.bf16.msra.mxu0 %v1426
        %2071 = vmatprep.subr.bf16.mxu0 %v1423
        %2072 = vmatpush2.bf16.msra.mxu0 %v1422
        %2073 = vmatprep.mubr.bf16.mxu0 %v273
        %2074 = vmatmul.mubr.bf16.gmra.mxu0 %v272
        %v2075 = vpop.f32.mrf.mxu0
        %v2076 = vadd.f32 %v2035, %v2075
        %v2077 = vpop.f32.mrf.mxu0
        %v2078 = vadd.f32 %v2037, %v2077
        %v2079 = vpop.f32.mrf.mxu0
        %v2080 = vpop.f32.mrf.mxu0
        %2081 = vdwg.mxu0
        %2082 = vmatprep.subr.bf16.mxu0 %v1483
        %2083 = vmatpush1.bf16.msra.mxu0 %v1482
        %2084 = vmatprep.subr.bf16.mxu0 %v1479
        %2085 = vmatpush1.bf16.msra.mxu0 %v1478
        %2086 = vmatprep.subr.bf16.mxu0 %v1475
        %2087 = vmatpush1.bf16.msra.mxu0 %v1474
        %2088 = vmatprep.subr.bf16.mxu0 %v1471
        %2089 = vmatpush1.bf16.msra.mxu0 %v1470
        %2090 = vmatprep.subr.bf16.mxu0 %v1467
        %2091 = vmatpush1.bf16.msra.mxu0 %v1466
        %2092 = vmatprep.subr.bf16.mxu0 %v1463
        %2093 = vmatpush1.bf16.msra.mxu0 %v1462
        %2094 = vmatprep.subr.bf16.mxu0 %v1459
        %2095 = vmatpush1.bf16.msra.mxu0 %v1458
        %2096 = vmatprep.subr.bf16.mxu0 %v1455
        %2097 = vmatpush1.bf16.msra.mxu0 %v1454
        %2098 = vmatprep.subr.bf16.mxu0 %v1515
        %2099 = vmatpush2.bf16.msra.mxu0 %v1514
        %2100 = vmatprep.subr.bf16.mxu0 %v1511
        %2101 = vmatpush2.bf16.msra.mxu0 %v1510
        %2102 = vmatprep.subr.bf16.mxu0 %v1507
        %2103 = vmatpush2.bf16.msra.mxu0 %v1506
        %2104 = vmatprep.subr.bf16.mxu0 %v1503
        %2105 = vmatpush2.bf16.msra.mxu0 %v1502
        %2106 = vmatprep.subr.bf16.mxu0 %v1499
        %2107 = vmatpush2.bf16.msra.mxu0 %v1498
        %2108 = vmatprep.subr.bf16.mxu0 %v1495
        %2109 = vmatpush2.bf16.msra.mxu0 %v1494
        %2110 = vmatprep.subr.bf16.mxu0 %v1491
        %2111 = vmatpush2.bf16.msra.mxu0 %v1490
        %2112 = vmatprep.subr.bf16.mxu0 %v1487
        %2113 = vmatpush2.bf16.msra.mxu0 %v1486
        %2114 = vmatprep.mubr.bf16.mxu0 %v275
        %2115 = vmatmul.mubr.bf16.gmra.mxu0 %v274
        %v2116 = vpop.f32.mrf.mxu0
        %v2117 = vadd.f32 %v2076, %v2116
        %v2118 = vpop.f32.mrf.mxu0
        %v2119 = vadd.f32 %v2078, %v2118
        %v2120 = vpop.f32.mrf.mxu0
        %v2121 = vpop.f32.mrf.mxu0
        %2122 = vdwg.mxu0
        %2123 = vmatprep.subr.bf16.mxu0 %v1547
        %2124 = vmatpush1.bf16.msra.mxu0 %v1546
        %2125 = vmatprep.subr.bf16.mxu0 %v1543
        %2126 = vmatpush1.bf16.msra.mxu0 %v1542
        %2127 = vmatprep.subr.bf16.mxu0 %v1539
        %2128 = vmatpush1.bf16.msra.mxu0 %v1538
        %2129 = vmatprep.subr.bf16.mxu0 %v1535
        %2130 = vmatpush1.bf16.msra.mxu0 %v1534
        %2131 = vmatprep.subr.bf16.mxu0 %v1531
        %2132 = vmatpush1.bf16.msra.mxu0 %v1530
        %2133 = vmatprep.subr.bf16.mxu0 %v1527
        %2134 = vmatpush1.bf16.msra.mxu0 %v1526
        %2135 = vmatprep.subr.bf16.mxu0 %v1523
        %2136 = vmatpush1.bf16.msra.mxu0 %v1522
        %2137 = vmatprep.subr.bf16.mxu0 %v1519
        %2138 = vmatpush1.bf16.msra.mxu0 %v1518
        %2139 = vmatprep.subr.bf16.mxu0 %v1579
        %2140 = vmatpush2.bf16.msra.mxu0 %v1578
        %2141 = vmatprep.subr.bf16.mxu0 %v1575
        %2142 = vmatpush2.bf16.msra.mxu0 %v1574
        %2143 = vmatprep.subr.bf16.mxu0 %v1571
        %2144 = vmatpush2.bf16.msra.mxu0 %v1570
        %2145 = vmatprep.subr.bf16.mxu0 %v1567
        %2146 = vmatpush2.bf16.msra.mxu0 %v1566
        %2147 = vmatprep.subr.bf16.mxu0 %v1563
        %2148 = vmatpush2.bf16.msra.mxu0 %v1562
        %2149 = vmatprep.subr.bf16.mxu0 %v1559
        %2150 = vmatpush2.bf16.msra.mxu0 %v1558
        %2151 = vmatprep.subr.bf16.mxu0 %v1555
        %2152 = vmatpush2.bf16.msra.mxu0 %v1554
        %2153 = vmatprep.subr.bf16.mxu0 %v1551
        %2154 = vmatpush2.bf16.msra.mxu0 %v1550
        %2155 = vmatprep.mubr.bf16.mxu0 %v277
        %2156 = vmatmul.mubr.bf16.gmra.mxu0 %v276
        %v2157 = vpop.f32.mrf.mxu0
        %v2158 = vadd.f32 %v2117, %v2157
        %v2159 = vpop.f32.mrf.mxu0
        %v2160 = vadd.f32 %v2119, %v2159
        %v2161 = vpop.f32.mrf.mxu0
        %v2162 = vpop.f32.mrf.mxu0
        %2163 = vdwg.mxu0
        %2164 = vst [vmem:[%s258] sm:$0xff] %v1994
        %2165 = vst [vmem:[%s258 + $0x8] sm:$0xff] %v1996
        %2166 = vst [vmem:[%s258 + $0x10] sm:$0xff] %v2158
        %2167 = vst [vmem:[%s258 + $0x18] sm:$0xff] %v2160
        %s2168 = sand.u32 %s121, 1
        %s2169 = scalar_lea.sflag [#allocation4], %s2168
        %s2170 = sand.u32 %s121, 1
        %s2171 = smul.addr %s2170, 32
        %s2172 = scalar_lea.vmem [#allocation8], %s2171
        // Predicated region
        $region45: #{tpu_custom_call.1} parent=31 // pred_check
          %p2173 = pneg %p131
        $region46: #{tpu_custom_call.1} parent=31 // pred_check_branch
          %2175 = sbr.rel (%p2173) target = $region48
        $region47: #{tpu_custom_call.1} parent=31 // pred_region
          %s2176 = smul.u32 4, %s25
          %s2178 = ssub.s32 512, 512
          %2179 = vsyncadd %s2169, %s2178
          %s2180 = smul.addr %s26, 8
          %s2181 = sadd.s32 %s2176, %s2180
          %s2182 = smul.addr %s2181, 128
          %s2183 = scalar_lea.hbm %s3, %s2182
          %s2185 = sshll.u32 %s2172, 4
          %s2186 = int_to_ptr.vmem [resolvable:$true] %s2185
          %2188 = dma.vmem_to_hbm [thread:$0]  %s2186, 512, %s2183, %s2169
        $region48: #{tpu_custom_call.1} parent=31 // pred_fallthru
          _
      $region32: #{tpu_custom_call.1} parent=5 // pred_fallthru
        _
      %p2189 = scmp.le.s32.totalorder 2, %s16
      // Predicated region
      $region49: #{tpu_custom_call.1} parent=5 // pred_check
        %p2190 = pneg %p2189
      $region50: #{tpu_custom_call.1} parent=5 // pred_check_branch
        %2192 = sbr.rel (%p2190) target = $region52
      $region51: #{tpu_custom_call.1} parent=5 // pred_region
        %s2193 = ssub.s32 %s16, 2
        // Predicated region
        $region53: #{tpu_custom_call.1} parent=51 // pred_check
          %p2194 = pneg %p137
        $region54: #{tpu_custom_call.1} parent=51 // pred_check_branch
          %2196 = sbr.rel (%p2194) target = $region56
        $region55: #{tpu_custom_call.1} parent=51 // pred_region
          %s2197 = sand.u32 %s122, 1
          %s2198 = scalar_lea.sflag [#allocation4], %s2197
          %s2199 = sand.u32 %s122, 1
          %s2200 = smul.addr %s2199, 32
          %s2201 = scalar_lea.vmem [#allocation8], %s2200
          %2202 = dma.done %s2198, 512
        $region56: #{tpu_custom_call.1} parent=51 // pred_fallthru
          _
      $region52: #{tpu_custom_call.1} parent=5 // pred_fallthru
        _
    $region6: #{tpu_custom_call.1} parent=1 // loop_footer
      %s20 = sadd.s32 1, %s16
    $region7: #{tpu_custom_call.1} parent=1 // loop_footer_branch
      %15 = sbr.rel target = $region3
    $region8: #{tpu_custom_call.1} parent=1 // loop_exit
      _
    %2203 = vsyncpa [#allocation3], 1
    %s2204 = scalar_lea.sflag [#allocation3], 1
    %2205 = vsyncpa %s2204, 1
    %2206 = vsyncpa [#allocation6], 1
    %s2207 = scalar_lea.sflag [#allocation6], 1
    %2208 = vsyncpa %s2207, 1
    %2209 = vsyncpa [#allocation4], 1
    %s2210 = scalar_lea.sflag [#allocation4], 1
    %2211 = vsyncpa %s2210, 1

</llo_original>
